<compile_context>
chip_gen: v5e
topology: v5e:2x2
jax: 0.10.0
libtpu: 0.0.40
codegen_flags: <defaults>
</compile_context>

<pallas_src>
import functools

import numpy as np
import jax
import jax.numpy as jnp
from jax.experimental import pallas as pl
from jax.experimental.pallas import tpu as pltpu


def _ceil_div(a, b):
    return -(-a // b)


# ----------------------------------------------------------------------------
# Pallas kernel: windowed indice_maxpool with a window-pass reduction axis.
#   starts_ref : SMEM prefetch, flat [n_tiles * n_passes] feature *block* index
#   nblk_ref   : SMEM prefetch, [n_tiles] number of valid passes for each tile
#   idx_ref    : [TB, K]        int32 GLOBAL input row per (out row, k), -1 = no pair
#   feat_ref   : [WINDOW, Cpad] feature window block for this (tile, pass)
#   out_ref    : [TB, Cpad]     written on the last pass
#   acc_ref    : [TB, Cpad] f32 scratch accumulator (persists across passes)
# ----------------------------------------------------------------------------
def _maxpool_kernel(starts_ref, nblk_ref, idx_ref, feat_ref, out_ref, acc_ref,
                    *, window, k_vol, n_passes):
    i = pl.program_id(0)            # output-row tile
    p = pl.program_id(1)            # window pass (reduction axis)

    @pl.when(p == 0)
    def _init():
        acc_ref[...] = jnp.zeros_like(acc_ref)

    @pl.when(p < nblk_ref[i])       # skip compute (and effectively DMA) for padded passes
    def _compute():
        feat = feat_ref[...]                                   # [W, Cpad]
        idx = idx_ref[...]                                     # [TB, K]
        start_row = starts_ref[i * n_passes + p] * window      # first global row of window
        # (1, W) iota: only W/128 vregs, vs the old [TB, W] constant.
        row_ids = jax.lax.broadcasted_iota(jnp.int32, (1, window), 1) + start_row

        # Static loop: k_vol is tiny (e.g. 9); slices are static, and accumulating
        # straight into the VMEM scratch keeps per-k live ranges bounded.
        for k in range(k_vol):
            idx_col = idx[:, k:k + 1]                          # [TB, 1] global row (-1 invalid)
            # One-hot gather in the feature dtype: exact (one nonzero per row, value 1).
            onehot = (idx_col == row_ids).astype(feat.dtype)   # [TB, W]
            gathered = jnp.dot(onehot, feat, preferred_element_type=jnp.float32)
            acc_ref[...] = jnp.maximum(acc_ref[...], gathered)  # zero-init == spconv buffer

    @pl.when(p == pl.num_programs(1) - 1)
    def _finalize():
        out_ref[...] = acc_ref[...].astype(out_ref.dtype)


# ----------------------------------------------------------------------------
# Device / VMEM configuration
# ----------------------------------------------------------------------------
def _tpu_config():
    """Returns (tile_rows, vmem_capacity_bytes, two_tensorcores)."""
    vmem_cap = 128 * 2 ** 20
    try:
        vmem_cap = int(pltpu.get_tpu_info().vmem_capacity_bytes)
    except Exception:
        pass
    try:
        kind = jax.devices()[0].device_kind.lower()
    except Exception:
        kind = ""
    is_v7 = ("v7" in kind) or ("7x" in kind) or ("tpu7" in kind)
    new_gen = ("v6" in kind) or is_v7
    tb = 256 if new_gen else 128      # MXU M-dim: 256 on v6e/v7x, 128 on v5e and older
    # TODO(synk): sweep TB per generation (v6e may prefer 512, v5e 256) once profiled.
    return tb, vmem_cap, is_v7


# ----------------------------------------------------------------------------
# Cached builder: pad + pallas_call + slice, jitted once per static config.
# ----------------------------------------------------------------------------
@functools.lru_cache(maxsize=64)
def _build_maxpool_fn(n_in, c, n_out, k_vol, tb, window, n_passes, c_pad,
                      n_in_pad, n_out_pad, dtype_str, vmem_limit):
    dtype = jnp.dtype(dtype_str)
    itemsize = dtype.itemsize
    n_tiles = n_out_pad // tb

    kernel = functools.partial(_maxpool_kernel, window=window, k_vol=k_vol,
                               n_passes=n_passes)

    idx_map = lambda i, p, starts, nblk: (i, 0)
    feat_map = lambda i, p, starts, nblk: (starts[i * n_passes + p], 0)
    out_map = lambda i, p, starts, nblk: (i, 0)

    cost = pl.CostEstimate(
        flops=2 * k_vol * n_out_pad * window * c_pad,
        transcendentals=0,
        bytes_accessed=(n_tiles * min(n_passes, 2) * window * c_pad * itemsize
                        + n_out_pad * k_vol * 4
                        + n_out_pad * c_pad * itemsize),
    )

    call = pl.pallas_call(
        kernel,
        out_shape=jax.ShapeDtypeStruct((n_out_pad, c_pad), dtype),
        grid_spec=pltpu.PrefetchScalarGridSpec(
            num_scalar_prefetch=2,
            grid=(n_tiles, n_passes),
            in_specs=[
                pl.BlockSpec((tb, k_vol), idx_map),
                pl.BlockSpec((window, c_pad), feat_map),
            ],
            out_specs=pl.BlockSpec((tb, c_pad), out_map),
            scratch_shapes=[pltpu.VMEM((tb, c_pad), jnp.float32)],
        ),
        compiler_params=pltpu.CompilerParams(
            dimension_semantics=("parallel", "arbitrary"),
            vmem_limit_bytes=vmem_limit,
        ),
        cost_estimate=cost,
    )

    def run(features, idx_dev, starts_dev, nblk_dev):
        # TODO(synk): callers with a static sparse structure should pre-pad/cache
        # features once; this per-call pad is an extra HBM write+read pass.
        feat_p = jnp.zeros((n_in_pad, c_pad), dtype).at[:n_in, :c].set(features)
        out = call(starts_dev, nblk_dev, idx_dev, feat_p)
        return out[:n_out, :c]

    return jax.jit(run)


def indice_maxpool_pallas(features, idx_table):
    """features: [N_in, C]; idx_table: [N_out, K] int32 (global input row, -1 = invalid)."""
    features = jnp.asarray(features)
    idx_table = np.asarray(idx_table, dtype=np.int32)
    n_in, c = features.shape
    n_out, k_vol = idx_table.shape
    if n_out == 0:
        return jnp.zeros((0, c), features.dtype)

    tb, vmem_cap, two_tc = _tpu_config()
    # On 2-TC parts (v7x) make sure the parallel tile axis has >= 2 tiles so both
    # TensorCores get work (never shrink tiles below 128 rows).
    if two_tc:
        while _ceil_div(n_out, tb) < 2 and tb > 128:
            tb //= 2

    c_pad = max(128, _ceil_div(c, 128) * 128)
    n_out_pad = _ceil_div(n_out, tb) * tb
    n_tiles = n_out_pad // tb
    itemsize = jnp.dtype(features.dtype).itemsize

    # ---- generation-aware VMEM budget -> cap on the per-pass feature window ----
    budget = int(vmem_cap * 0.6)                      # ~38 MiB on v7x, ~77 MiB on v5e/v6e
    fixed = (2 * tb * 128 * 4                         # idx tile (lane-padded), double-buffered
             + 2 * tb * c_pad * itemsize              # output tile, double-buffered
             + 2 * tb * c_pad * 4)                    # f32 accumulator + gathered temp
    per_col = 2 * c_pad * itemsize + tb * (itemsize + 1)   # window dbl-buf + one-hot temporaries
    cap_w = max(128, ((budget - fixed) // per_col // 128) * 128)

    # Pad the rulebook; padded output rows have no valid pairs.
    idx_p = np.full((n_out_pad, k_vol), -1, dtype=np.int32)
    idx_p[:n_out] = idx_table
    tile_idx = idx_p.reshape(n_tiles, tb, k_vol)
    valid = tile_idx >= 0
    has = valid.any(axis=(1, 2))
    big = np.iinfo(np.int32).max
    mins = np.where(has, np.where(valid, tile_idx, big).min(axis=(1, 2)), 0).astype(np.int64)
    maxs = np.where(has, np.where(valid, tile_idx, -1).max(axis=(1, 2)), 0).astype(np.int64)
    spans = np.where(has, maxs - mins + 1, 1)

    # WINDOW ~ typical tile span (most tiles take 1-2 passes), bounded below so a
    # single badly-localized tile cannot explode the pass count, and above by the
    # VMEM cap. Outlier tiles take extra gated passes instead of inflating the
    # window (and MXU/DMA cost) for every tile.
    max_passes = 4
    w_typ = int(np.percentile(spans[has], 75)) if has.any() else 1
    w_tail = _ceil_div(int(spans.max()), max_passes)
    window = int(min(cap_w,
                     max(128,
                         _ceil_div(w_typ, 128) * 128,
                         _ceil_div(w_tail, 128) * 128)))

    # Per-tile list of touched feature window blocks (global row // window).
    blocks = []
    for t in range(n_tiles):
        v = tile_idx[t][valid[t]]
        blocks.append(np.unique(v // window) if v.size else np.zeros(0, np.int64))
    n_passes = max(1, max(len(b) for b in blocks))
    starts = np.zeros((n_tiles, n_passes), np.int32)
    nblk = np.zeros((n_tiles,), np.int32)
    for t, b in enumerate(blocks):
        nblk[t] = len(b)
        if len(b):
            starts[t, :len(b)] = b
            starts[t, len(b):] = b[-1]   # repeat last block -> consecutive-pass DMA dedup

    n_in_pad = max(window, _ceil_div(n_in, window) * window)

    est = fixed + window * per_col
    vmem_limit = int(min(vmem_cap - 8 * 2 ** 20,
                         max(32 * 2 ** 20, budget, int(1.2 * est))))

    fn = _build_maxpool_fn(n_in, c, n_out, k_vol, tb, window, n_passes, c_pad,
                           n_in_pad, n_out_pad, str(jnp.dtype(features.dtype)),
                           vmem_limit)
    return fn(features,
              jnp.asarray(idx_p),
              jnp.asarray(starts.reshape(-1)),   # flat 1-D: SMEM-padding friendly
              jnp.asarray(nblk))


# ----------------------------------------------------------------------------
# Glue: rulebook construction (numpy), equivalent to get_indice_pairs for
# non-submanifold pooling. Output rows are the unique output coordinates that
# receive at least one input pair, ordered lexicographically (deterministic).
# ----------------------------------------------------------------------------
def get_conv_output_size(spatial, ksize, stride, padding, dilation):
    return [(s + 2 * p - d * (k - 1) - 1) // st + 1
            for s, k, st, p, d in zip(spatial, ksize, stride, padding, dilation)]


def build_rulebook_2d(indices, batch_size, spatial, ksize, stride, padding, dilation):
    H, W = spatial
    outH, outW = get_conv_output_size(spatial, ksize, stride, padding, dilation)
    n_in = indices.shape[0]

    in_grid = -np.ones((batch_size, H, W), np.int64)
    in_grid[indices[:, 0], indices[:, 1], indices[:, 2]] = np.arange(n_in)

    out_set = set()
    for i in range(n_in):
        b, h, w = int(indices[i, 0]), int(indices[i, 1]), int(indices[i, 2])
        for kh in range(ksize[0]):
            for kw in range(ksize[1]):
                oh_n = h + padding[0] - kh * dilation[0]
                ow_n = w + padding[1] - kw * dilation[1]
                if oh_n % stride[0] == 0 and ow_n % stride[1] == 0:
                    oh, ow = oh_n // stride[0], ow_n // stride[1]
                    if 0 <= oh < outH and 0 <= ow < outW:
                        out_set.add((b, oh, ow))
    outids = np.array(sorted(out_set), np.int32).reshape(-1, 3)
    n_out = outids.shape[0]

    k_vol = ksize[0] * ksize[1]
    idx_table = -np.ones((n_out, k_vol), np.int32)
    for o in range(n_out):
        b, oh, ow = int(outids[o, 0]), int(outids[o, 1]), int(outids[o, 2])
        k = 0
        for kh in range(ksize[0]):
            for kw in range(ksize[1]):
                ih = oh * stride[0] - padding[0] + kh * dilation[0]
                iw = ow * stride[1] - padding[1] + kw * dilation[1]
                if 0 <= ih < H and 0 <= iw < W:
                    idx_table[o, k] = in_grid[b, ih, iw]
                k += 1
    return outids, idx_table, (outH, outW)


class SparseMaxPoolPallas:
    """ndim=2 sparse max pool (non-subm), forward only."""

    def __init__(self, ndim, kernel_size, stride=1, padding=0, dilation=1, subm=False):
        tolist = lambda v: list(v) if isinstance(v, (list, tuple)) else [v] * ndim
        self.ndim = ndim
        self.kernel_size = tolist(kernel_size)
        self.stride = tolist(stride)
        self.padding = tolist(padding)
        self.dilation = tolist(dilation)
        self.subm = subm
        # TODO(synk): subm=True path (identity output indices) not exercised here.

    def __call__(self, features, indices, spatial_shape, batch_size):
        outids, idx_table, out_spatial = build_rulebook_2d(
            np.asarray(indices), batch_size, spatial_shape,
            self.kernel_size, self.stride, self.padding, self.dilation)
        out_features = indice_maxpool_pallas(features, idx_table)
        return out_features, outids, out_spatial


# ----------------------------------------------------------------------------
# Demo / correctness check
# ----------------------------------------------------------------------------
if __name__ == "__main__":
    B, C, H, W = 2, 4, 16, 16
    key = jax.random.PRNGKey(0)
    k_mask, k_feat = jax.random.split(key)

    # dense NCHW input -> sparse (COO) representation
    dense = jax.random.normal(k_feat, (B, C, H, W), jnp.float32)
    active = np.asarray(jax.random.bernoulli(k_mask, 0.2, (B, H, W)))
    bb, hh, ww = np.nonzero(active)
    indices = np.stack([bb, hh, ww], axis=1).astype(np.int32)     # [N_in, 3]
    features = jnp.asarray(np.asarray(dense)[bb, :, hh, ww])      # [N_in, C]

    pool = SparseMaxPoolPallas(ndim=2, kernel_size=3, stride=2, padding=1)
    out_features, outids, out_spatial = pool(features, indices, (H, W), B)
    out_features = jax.block_until_ready(out_features)

    # numpy reference (spconv semantics: output buffer zero-initialized)
    feat_np = np.asarray(features)
    _, idx_table, _ = build_rulebook_2d(indices, B, (H, W),
                                        pool.kernel_size, pool.stride,
                                        pool.padding, pool.dilation)
    n_out = idx_table.shape[0]
    ref = np.zeros((n_out, C), np.float32)
    for o in range(n_out):
        for k in range(idx_table.shape[1]):
            i = idx_table[o, k]
            if i >= 0:
                ref[o] = np.maximum(ref[o], feat_np[i])

    assert out_features.shape == (n_out, C)
    np.testing.assert_allclose(np.asarray(out_features), ref, rtol=1e-5, atol=1e-5)
    print("KERNEL_OK")
</pallas_src>

<mosaic_0001>
module attributes {stable_mosaic.version = 11 : i64} {
  func.func @_maxpool_kernel(%arg0: i32, %arg1: i32, %arg2: memref<1xi32, #tpu.memory_space<smem>>, %arg3: memref<1xi32, #tpu.memory_space<smem>>, %arg4: memref<128x9xi32, #tpu.memory_space<vmem>>, %arg5: memref<128x128xf32, #tpu.memory_space<vmem>>, %arg6: memref<128x128xf32, #tpu.memory_space<vmem>>, %arg7: memref<128x128xf32, #tpu.memory_space<vmem>>) attributes {dimension_semantics = [#tpu.dimension_semantics<parallel>, #tpu.dimension_semantics<arbitrary>], iteration_bounds = array<i64: 1, 1>, scalar_prefetch = 2 : i64, scratch_operands = 1 : i64, tpu.core_type = #tpu.core_type<tc>, window_params = [{transform_indices = @transform_0, window_bounds = array<i64: 128, 9>}, {transform_indices = @transform_1, window_bounds = array<i64: 128, 128>}, {transform_indices = @transform_2, window_bounds = array<i64: 128, 128>}]} {
    %c0_i32 = arith.constant 0 : i32
    %0 = arith.cmpi eq, %arg1, %c0_i32 : i32
    %1 = arith.extui %0 : i1 to i32
    %c0_i32_0 = arith.constant 0 : i32
    %2 = arith.cmpi ne, %1, %c0_i32_0 : i32
    scf.if %2 {
      %cst = arith.constant 0.000000e+00 : f32
      %11 = vector.broadcast %cst : f32 to vector<128x128xf32>
      %c0 = arith.constant 0 : index
      %c0_4 = arith.constant 0 : index
      %12 = vector.load %arg7[%c0, %c0_4] : memref<128x128xf32, #tpu.memory_space<vmem>>, vector<128x128xf32>
      tpu.vector_store %arg7[%c0, %c0_4], %11 {strides = array<i32>} : memref<128x128xf32, #tpu.memory_space<vmem>>, vector<128x128xf32>,
    } else {
    }
    %3 = arith.index_cast %arg0 : i32 to index
    %4 = memref.load %arg3[%3] : memref<1xi32, #tpu.memory_space<smem>>
    %5 = arith.cmpi slt, %arg1, %4 : i32
    %6 = arith.extui %5 : i1 to i32
    %c0_i32_1 = arith.constant 0 : i32
    %7 = arith.cmpi ne, %6, %c0_i32_1 : i32
    scf.if %7 {
      %c0 = arith.constant 0 : index
      %c0_4 = arith.constant 0 : index
      %11 = vector.load %arg5[%c0, %c0_4] : memref<128x128xf32, #tpu.memory_space<vmem>>, vector<128x128xf32>
      %c0_5 = arith.constant 0 : index
      %c0_6 = arith.constant 0 : index
      %12 = vector.load %arg4[%c0_5, %c0_6] : memref<128x9xi32, #tpu.memory_space<vmem>>, vector<128x9xi32>
      %c1_i32 = arith.constant 1 : i32
      %13 = arith.muli %arg0, %c1_i32 : i32
      %14 = arith.addi %13, %arg1 : i32
      %15 = arith.index_cast %14 : i32 to index
      %16 = memref.load %arg2[%15] : memref<1xi32, #tpu.memory_space<smem>>
      %c128_i32 = arith.constant 128 : i32
      %17 = arith.muli %16, %c128_i32 : i32
      %18 = tpu.iota {dimensions = array<i32: 1>} : vector<1x128xi32>
      %19 = vector.broadcast %17 : i32 to vector<1x128xi32>
      %20 = arith.addi %18, %19 : vector<1x128xi32>
      %21 = vector.extract_strided_slice %12 {offsets = [0, 0], sizes = [128, 1], strides = [1, 1]} : vector<128x9xi32> to vector<128x1xi32>
      %22 = vector.broadcast %21 : vector<128x1xi32> to vector<128x128xi32>
      %23 = vector.broadcast %20 : vector<1x128xi32> to vector<128x128xi32>
      %24 = arith.cmpi eq, %22, %23 : vector<128x128xi32>
      %25 = arith.extui %24 : vector<128x128xi1> to vector<128x128xi32>
      %26 = arith.sitofp %25 : vector<128x128xi32> to vector<128x128xf32>
      %cst = arith.constant dense<0.000000e+00> : vector<128x128xf32>
      %27 = tpu.matmul %26, %11, %cst {dimension_numbers = #tpu.dot_dimension_numbers<[1], [0], [0], [1], [0, 0, 1, 1], [], []>} : vector<128x128xf32>, vector<128x128xf32>, vector<128x128xf32> -> vector<128x128xf32>
      %c0_7 = arith.constant 0 : index
      %c0_8 = arith.constant 0 : index
      %28 = vector.load %arg7[%c0_7, %c0_8] : memref<128x128xf32, #tpu.memory_space<vmem>>, vector<128x128xf32>
      %29 = arith.maximumf %28, %27 : vector<128x128xf32>
      %c0_9 = arith.constant 0 : index
      %c0_10 = arith.constant 0 : index
      %30 = vector.load %arg7[%c0_9, %c0_10] : memref<128x128xf32, #tpu.memory_space<vmem>>, vector<128x128xf32>
      tpu.vector_store %arg7[%c0_9, %c0_10], %29 {strides = array<i32>} : memref<128x128xf32, #tpu.memory_space<vmem>>, vector<128x128xf32>,
      %31 = vector.extract_strided_slice %12 {offsets = [0, 1], sizes = [128, 1], strides = [1, 1]} : vector<128x9xi32> to vector<128x1xi32>
      %32 = vector.broadcast %31 : vector<128x1xi32> to vector<128x128xi32>
      %33 = vector.broadcast %20 : vector<1x128xi32> to vector<128x128xi32>
      %34 = arith.cmpi eq, %32, %33 : vector<128x128xi32>
      %35 = arith.extui %34 : vector<128x128xi1> to vector<128x128xi32>
      %36 = arith.sitofp %35 : vector<128x128xi32> to vector<128x128xf32>
      %cst_11 = arith.constant dense<0.000000e+00> : vector<128x128xf32>
      %37 = tpu.matmul %36, %11, %cst_11 {dimension_numbers = #tpu.dot_dimension_numbers<[1], [0], [0], [1], [0, 0, 1, 1], [], []>} : vector<128x128xf32>, vector<128x128xf32>, vector<128x128xf32> -> vector<128x128xf32>
      %c0_12 = arith.constant 0 : index
      %c0_13 = arith.constant 0 : index
      %38 = vector.load %arg7[%c0_12, %c0_13] : memref<128x128xf32, #tpu.memory_space<vmem>>, vector<128x128xf32>
      %39 = arith.maximumf %38, %37 : vector<128x128xf32>
      %c0_14 = arith.constant 0 : index
      %c0_15 = arith.constant 0 : index
      %40 = vector.load %arg7[%c0_14, %c0_15] : memref<128x128xf32, #tpu.memory_space<vmem>>, vector<128x128xf32>
      tpu.vector_store %arg7[%c0_14, %c0_15], %39 {strides = array<i32>} : memref<128x128xf32, #tpu.memory_space<vmem>>, vector<128x128xf32>,
      %41 = vector.extract_strided_slice %12 {offsets = [0, 2], sizes = [128, 1], strides = [1, 1]} : vector<128x9xi32> to vector<128x1xi32>
      %42 = vector.broadcast %41 : vector<128x1xi32> to vector<128x128xi32>
      %43 = vector.broadcast %20 : vector<1x128xi32> to vector<128x128xi32>
      %44 = arith.cmpi eq, %42, %43 : vector<128x128xi32>
      %45 = arith.extui %44 : vector<128x128xi1> to vector<128x128xi32>
      %46 = arith.sitofp %45 : vector<128x128xi32> to vector<128x128xf32>
      %cst_16 = arith.constant dense<0.000000e+00> : vector<128x128xf32>
      %47 = tpu.matmul %46, %11, %cst_16 {dimension_numbers = #tpu.dot_dimension_numbers<[1], [0], [0], [1], [0, 0, 1, 1], [], []>} : vector<128x128xf32>, vector<128x128xf32>, vector<128x128xf32> -> vector<128x128xf32>
      %c0_17 = arith.constant 0 : index
      %c0_18 = arith.constant 0 : index
      %48 = vector.load %arg7[%c0_17, %c0_18] : memref<128x128xf32, #tpu.memory_space<vmem>>, vector<128x128xf32>
      %49 = arith.maximumf %48, %47 : vector<128x128xf32>
      %c0_19 = arith.constant 0 : index
      %c0_20 = arith.constant 0 : index
      %50 = vector.load %arg7[%c0_19, %c0_20] : memref<128x128xf32, #tpu.memory_space<vmem>>, vector<128x128xf32>
      tpu.vector_store %arg7[%c0_19, %c0_20], %49 {strides = array<i32>} : memref<128x128xf32, #tpu.memory_space<vmem>>, vector<128x128xf32>,
      %51 = vector.extract_strided_slice %12 {offsets = [0, 3], sizes = [128, 1], strides = [1, 1]} : vector<128x9xi32> to vector<128x1xi32>
      %52 = vector.broadcast %51 : vector<128x1xi32> to vector<128x128xi32>
      %53 = vector.broadcast %20 : vector<1x128xi32> to vector<128x128xi32>
      %54 = arith.cmpi eq, %52, %53 : vector<128x128xi32>
      %55 = arith.extui %54 : vector<128x128xi1> to vector<128x128xi32>
      %56 = arith.sitofp %55 : vector<128x128xi32> to vector<128x128xf32>
      %cst_21 = arith.constant dense<0.000000e+00> : vector<128x128xf32>
      %57 = tpu.matmul %56, %11, %cst_21 {dimension_numbers = #tpu.dot_dimension_numbers<[1], [0], [0], [1], [0, 0, 1, 1], [], []>} : vector<128x128xf32>, vector<128x128xf32>, vector<128x128xf32> -> vector<128x128xf32>
      %c0_22 = arith.constant 0 : index
      %c0_23 = arith.constant 0 : index
      %58 = vector.load %arg7[%c0_22, %c0_23] : memref<128x128xf32, #tpu.memory_space<vmem>>, vector<128x128xf32>
      %59 = arith.maximumf %58, %57 : vector<128x128xf32>
      %c0_24 = arith.constant 0 : index
      %c0_25 = arith.constant 0 : index
      %60 = vector.load %arg7[%c0_24, %c0_25] : memref<128x128xf32, #tpu.memory_space<vmem>>, vector<128x128xf32>
      tpu.vector_store %arg7[%c0_24, %c0_25], %59 {strides = array<i32>} : memref<128x128xf32, #tpu.memory_space<vmem>>, vector<128x128xf32>,
      %61 = vector.extract_strided_slice %12 {offsets = [0, 4], sizes = [128, 1], strides = [1, 1]} : vector<128x9xi32> to vector<128x1xi32>
      %62 = vector.broadcast %61 : vector<128x1xi32> to vector<128x128xi32>
      %63 = vector.broadcast %20 : vector<1x128xi32> to vector<128x128xi32>
      %64 = arith.cmpi eq, %62, %63 : vector<128x128xi32>
      %65 = arith.extui %64 : vector<128x128xi1> to vector<128x128xi32>
      %66 = arith.sitofp %65 : vector<128x128xi32> to vector<128x128xf32>
      %cst_26 = arith.constant dense<0.000000e+00> : vector<128x128xf32>
      %67 = tpu.matmul %66, %11, %cst_26 {dimension_numbers = #tpu.dot_dimension_numbers<[1], [0], [0], [1], [0, 0, 1, 1], [], []>} : vector<128x128xf32>, vector<128x128xf32>, vector<128x128xf32> -> vector<128x128xf32>
      %c0_27 = arith.constant 0 : index
      %c0_28 = arith.constant 0 : index
      %68 = vector.load %arg7[%c0_27, %c0_28] : memref<128x128xf32, #tpu.memory_space<vmem>>, vector<128x128xf32>
      %69 = arith.maximumf %68, %67 : vector<128x128xf32>
      %c0_29 = arith.constant 0 : index
      %c0_30 = arith.constant 0 : index
      %70 = vector.load %arg7[%c0_29, %c0_30] : memref<128x128xf32, #tpu.memory_space<vmem>>, vector<128x128xf32>
      tpu.vector_store %arg7[%c0_29, %c0_30], %69 {strides = array<i32>} : memref<128x128xf32, #tpu.memory_space<vmem>>, vector<128x128xf32>,
      %71 = vector.extract_strided_slice %12 {offsets = [0, 5], sizes = [128, 1], strides = [1, 1]} : vector<128x9xi32> to vector<128x1xi32>
      %72 = vector.broadcast %71 : vector<128x1xi32> to vector<128x128xi32>
      %73 = vector.broadcast %20 : vector<1x128xi32> to vector<128x128xi32>
      %74 = arith.cmpi eq, %72, %73 : vector<128x128xi32>
      %75 = arith.extui %74 : vector<128x128xi1> to vector<128x128xi32>
      %76 = arith.sitofp %75 : vector<128x128xi32> to vector<128x128xf32>
      %cst_31 = arith.constant dense<0.000000e+00> : vector<128x128xf32>
      %77 = tpu.matmul %76, %11, %cst_31 {dimension_numbers = #tpu.dot_dimension_numbers<[1], [0], [0], [1], [0, 0, 1, 1], [], []>} : vector<128x128xf32>, vector<128x128xf32>, vector<128x128xf32> -> vector<128x128xf32>
      %c0_32 = arith.constant 0 : index
      %c0_33 = arith.constant 0 : index
      %78 = vector.load %arg7[%c0_32, %c0_33] : memref<128x128xf32, #tpu.memory_space<vmem>>, vector<128x128xf32>
      %79 = arith.maximumf %78, %77 : vector<128x128xf32>
      %c0_34 = arith.constant 0 : index
      %c0_35 = arith.constant 0 : index
      %80 = vector.load %arg7[%c0_34, %c0_35] : memref<128x128xf32, #tpu.memory_space<vmem>>, vector<128x128xf32>
      tpu.vector_store %arg7[%c0_34, %c0_35], %79 {strides = array<i32>} : memref<128x128xf32, #tpu.memory_space<vmem>>, vector<128x128xf32>,
      %81 = vector.extract_strided_slice %12 {offsets = [0, 6], sizes = [128, 1], strides = [1, 1]} : vector<128x9xi32> to vector<128x1xi32>
      %82 = vector.broadcast %81 : vector<128x1xi32> to vector<128x128xi32>
      %83 = vector.broadcast %20 : vector<1x128xi32> to vector<128x128xi32>
      %84 = arith.cmpi eq, %82, %83 : vector<128x128xi32>
      %85 = arith.extui %84 : vector<128x128xi1> to vector<128x128xi32>
      %86 = arith.sitofp %85 : vector<128x128xi32> to vector<128x128xf32>
      %cst_36 = arith.constant dense<0.000000e+00> : vector<128x128xf32>
      %87 = tpu.matmul %86, %11, %cst_36 {dimension_numbers = #tpu.dot_dimension_numbers<[1], [0], [0], [1], [0, 0, 1, 1], [], []>} : vector<128x128xf32>, vector<128x128xf32>, vector<128x128xf32> -> vector<128x128xf32>
      %c0_37 = arith.constant 0 : index
      %c0_38 = arith.constant 0 : index
      %88 = vector.load %arg7[%c0_37, %c0_38] : memref<128x128xf32, #tpu.memory_space<vmem>>, vector<128x128xf32>
      %89 = arith.maximumf %88, %87 : vector<128x128xf32>
      %c0_39 = arith.constant 0 : index
      %c0_40 = arith.constant 0 : index
      %90 = vector.load %arg7[%c0_39, %c0_40] : memref<128x128xf32, #tpu.memory_space<vmem>>, vector<128x128xf32>
      tpu.vector_store %arg7[%c0_39, %c0_40], %89 {strides = array<i32>} : memref<128x128xf32, #tpu.memory_space<vmem>>, vector<128x128xf32>,
      %91 = vector.extract_strided_slice %12 {offsets = [0, 7], sizes = [128, 1], strides = [1, 1]} : vector<128x9xi32> to vector<128x1xi32>
      %92 = vector.broadcast %91 : vector<128x1xi32> to vector<128x128xi32>
      %93 = vector.broadcast %20 : vector<1x128xi32> to vector<128x128xi32>
      %94 = arith.cmpi eq, %92, %93 : vector<128x128xi32>
      %95 = arith.extui %94 : vector<128x128xi1> to vector<128x128xi32>
      %96 = arith.sitofp %95 : vector<128x128xi32> to vector<128x128xf32>
      %cst_41 = arith.constant dense<0.000000e+00> : vector<128x128xf32>
      %97 = tpu.matmul %96, %11, %cst_41 {dimension_numbers = #tpu.dot_dimension_numbers<[1], [0], [0], [1], [0, 0, 1, 1], [], []>} : vector<128x128xf32>, vector<128x128xf32>, vector<128x128xf32> -> vector<128x128xf32>
      %c0_42 = arith.constant 0 : index
      %c0_43 = arith.constant 0 : index
      %98 = vector.load %arg7[%c0_42, %c0_43] : memref<128x128xf32, #tpu.memory_space<vmem>>, vector<128x128xf32>
      %99 = arith.maximumf %98, %97 : vector<128x128xf32>
      %c0_44 = arith.constant 0 : index
      %c0_45 = arith.constant 0 : index
      %100 = vector.load %arg7[%c0_44, %c0_45] : memref<128x128xf32, #tpu.memory_space<vmem>>, vector<128x128xf32>
      tpu.vector_store %arg7[%c0_44, %c0_45], %99 {strides = array<i32>} : memref<128x128xf32, #tpu.memory_space<vmem>>, vector<128x128xf32>,
      %101 = vector.extract_strided_slice %12 {offsets = [0, 8], sizes = [128, 1], strides = [1, 1]} : vector<128x9xi32> to vector<128x1xi32>
      %102 = vector.broadcast %101 : vector<128x1xi32> to vector<128x128xi32>
      %103 = vector.broadcast %20 : vector<1x128xi32> to vector<128x128xi32>
      %104 = arith.cmpi eq, %102, %103 : vector<128x128xi32>
      %105 = arith.extui %104 : vector<128x128xi1> to vector<128x128xi32>
      %106 = arith.sitofp %105 : vector<128x128xi32> to vector<128x128xf32>
      %cst_46 = arith.constant dense<0.000000e+00> : vector<128x128xf32>
      %107 = tpu.matmul %106, %11, %cst_46 {dimension_numbers = #tpu.dot_dimension_numbers<[1], [0], [0], [1], [0, 0, 1, 1], [], []>} : vector<128x128xf32>, vector<128x128xf32>, vector<128x128xf32> -> vector<128x128xf32>
      %c0_47 = arith.constant 0 : index
      %c0_48 = arith.constant 0 : index
      %108 = vector.load %arg7[%c0_47, %c0_48] : memref<128x128xf32, #tpu.memory_space<vmem>>, vector<128x128xf32>
      %109 = arith.maximumf %108, %107 : vector<128x128xf32>
      %c0_49 = arith.constant 0 : index
      %c0_50 = arith.constant 0 : index
      %110 = vector.load %arg7[%c0_49, %c0_50] : memref<128x128xf32, #tpu.memory_space<vmem>>, vector<128x128xf32>
      tpu.vector_store %arg7[%c0_49, %c0_50], %109 {strides = array<i32>} : memref<128x128xf32, #tpu.memory_space<vmem>>, vector<128x128xf32>,
    } else {
    }
    %c0_i32_2 = arith.constant 0 : i32
    %8 = arith.cmpi eq, %arg1, %c0_i32_2 : i32
    %9 = arith.extui %8 : i1 to i32
    %c0_i32_3 = arith.constant 0 : i32
    %10 = arith.cmpi ne, %9, %c0_i32_3 : i32
    scf.if %10 {
      %c0 = arith.constant 0 : index
      %c0_4 = arith.constant 0 : index
      %11 = vector.load %arg7[%c0, %c0_4] : memref<128x128xf32, #tpu.memory_space<vmem>>, vector<128x128xf32>
      %c0_5 = arith.constant 0 : index
      %c0_6 = arith.constant 0 : index
      %12 = vector.load %arg6[%c0_5, %c0_6] : memref<128x128xf32, #tpu.memory_space<vmem>>, vector<128x128xf32>
      tpu.vector_store %arg6[%c0_5, %c0_6], %11 {strides = array<i32>} : memref<128x128xf32, #tpu.memory_space<vmem>>, vector<128x128xf32>,
    } else {
    }
    return
  }
  func.func @transform_0(%arg0: i32, %arg1: i32, %arg2: memref<1xi32, #tpu.memory_space<smem>>, %arg3: memref<1xi32, #tpu.memory_space<smem>>) -> (i32, i32) {
    %c0_i32 = arith.constant 0 : i32
    %c0_i32_0 = arith.constant 0 : i32
    return %arg0, %c0_i32 : i32, i32
  }
  func.func @transform_1(%arg0: i32, %arg1: i32, %arg2: memref<1xi32, #tpu.memory_space<smem>>, %arg3: memref<1xi32, #tpu.memory_space<smem>>) -> (i32, i32) {
    %c1_i32 = arith.constant 1 : i32
    %0 = arith.muli %arg0, %c1_i32 : i32
    %1 = arith.addi %0, %arg1 : i32
    %2 = arith.index_cast %1 : i32 to index
    %3 = memref.load %arg2[%2] : memref<1xi32, #tpu.memory_space<smem>>
    %c0_i32 = arith.constant 0 : i32
    %c0_i32_0 = arith.constant 0 : i32
    return %3, %c0_i32 : i32, i32
  }
  func.func @transform_2(%arg0: i32, %arg1: i32, %arg2: memref<1xi32, #tpu.memory_space<smem>>, %arg3: memref<1xi32, #tpu.memory_space<smem>>) -> (i32, i32) {
    %c0_i32 = arith.constant 0 : i32
    %c0_i32_0 = arith.constant 0 : i32
    return %arg0, %c0_i32 : i32, i32
  }
}

</mosaic_0001>

<llo_original>
// kernel: run.1
$region0: #{run.1}
  #allocation0 [shape = 'u32[]', space=smem, size = 0x4, offset = 0x4, fixed_abs, tag = 'smem constant byte address 0x4 - core index']
  #allocation1 [shape = 'u32[72,128]{1,0:T(1,128)}', space=vmem, size = 0x9000, scoped, tag = 'internal scratch']
  #allocation2 [shape = 'f32[128,128]{1,0:T(8,128)}', space=vmem, size = 0x10000, scoped, tag = 'scratch operand']
  #allocation3 [shape = 's32[1]{0}', space=sflag, size = 0x4, scoped, tag = 'scoped memory for run.1']
  #allocation4 [shape = 's32[1]{0:T(128)S(6)}', space=smem, size = 0x200, scoped, tag = 'prefetched SMEM operand 0']
  #allocation5 [shape = 's32[1]{0:T(128)S(6)}', space=smem, size = 0x200, scoped, tag = 'prefetched SMEM operand 1']
  %s0 = inlined_call_operand.<no memory space> [shape: s32[1], index: 0, kind: input, shape index: {}]
  %s1 = inlined_call_operand.<no memory space> [shape: s32[1], index: 1, kind: input, shape index: {}]
  %s2 = inlined_call_operand.vmem [shape: s32[128,9], index: 2, kind: input, shape index: {}]
  %s3 = inlined_call_operand.vmem [shape: f32[128,128], index: 3, kind: input, shape index: {}]
  %s4 = inlined_call_operand.vmem [shape: f32[128,128], index: 4, kind: output, shape index: {}]
  %s5 = sld [smem:[#allocation0]]
  $region30: #{run.1} parent=0
    _
  %s7 = ssub.s32 1, %s5
  %s8 = scalar_select 0, %s7, %s5
  %9 = sst [smem:[#allocation4]] %s0
  %10 = sst [smem:[#allocation5]] %s1
  // Predicated region
  $region2: #{run.1} parent=0 // pred_check
    _
  $region3: #{run.1} parent=0 // pred_check_branch
    %12 = sbr.rel (0) target = $region5
  $region4: #{run.1} parent=0 // pred_region
    _
  $region5: #{run.1} parent=0 // pred_fallthru
    _
  // Predicated region
  $region6: #{run.1} parent=0 // pred_check
    _
  $region7: #{run.1} parent=0 // pred_check_branch
    %14 = sbr.rel (0) target = $region9
  $region8: #{run.1} parent=0 // pred_region
    %s15 = sadd.s32 0, 0
    %s16 = sld [smem:[#allocation4 + %s15]]
    %s17 = smul.u32 16, %s16
    %p18 = scmp.lt.s32.totalorder %s17, 15
    %s19 = scalar_select %p18, %s17, 15
    %s20 = smul.addr %s19, 8
    %s21 = scalar_lea.vmem %s3, %s20
    %s22 = sadd.s32 0, 0
    %s23 = sld [smem:[#allocation4 + %s22]]
    %s24 = smul.u32 16, %s23
  $region9: #{run.1} parent=0 // pred_fallthru
    _
  %s25 = sadd.s32 0, 0
  %s26 = sld [smem:[#allocation4 + %s25]]
  %s27 = smul.u32 16, %s26
  %p28 = scmp.lt.s32.totalorder %s27, 15
  %s29 = scalar_select %p28, %s27, 15
  %s30 = smul.addr %s29, 8
  %s31 = scalar_lea.vmem %s3, %s30
  %s32 = sadd.s32 0, 0
  %s33 = sld [smem:[#allocation4 + %s32]]
  %s34 = smul.u32 16, %s33
  %p35 = scmp.lt.s32.totalorder %s34, 15
  %s36 = scalar_select %p35, %s34, 15
  %s37 = smul.addr %s36, 8
  %s38 = scalar_lea.vmem %s3, %s37
  %s39 = sadd.s32 0, 0
  %s40 = sld [smem:[#allocation4 + %s39]]
  %s41 = smul.u32 16, %s40
  %p42 = scmp.eq.s32.totalorder 0, 0
  // Predicated region
  $region10: #{run.1} parent=0 // pred_check
    %p43 = pneg %p42
  $region11: #{run.1} parent=0 // pred_check_branch
    %45 = sbr.rel (%p43) target = $region13
  $region12: #{run.1} parent=0 // pred_region
    %46 = vst [vmem:[#allocation2] sm:$0xff] 0.0
    %47 = vst [vmem:[#allocation2 + $0x8] sm:$0xff] 0.0
    %48 = vst [vmem:[#allocation2 + $0x10] sm:$0xff] 0.0
    %49 = vst [vmem:[#allocation2 + $0x18] sm:$0xff] 0.0
    %50 = vst [vmem:[#allocation2 + $0x20] sm:$0xff] 0.0
    %51 = vst [vmem:[#allocation2 + $0x28] sm:$0xff] 0.0
    %52 = vst [vmem:[#allocation2 + $0x30] sm:$0xff] 0.0
    %53 = vst [vmem:[#allocation2 + $0x38] sm:$0xff] 0.0
    %54 = vst [vmem:[#allocation2 + $0x40] sm:$0xff] 0.0
    %55 = vst [vmem:[#allocation2 + $0x48] sm:$0xff] 0.0
    %56 = vst [vmem:[#allocation2 + $0x50] sm:$0xff] 0.0
    %57 = vst [vmem:[#allocation2 + $0x58] sm:$0xff] 0.0
    %58 = vst [vmem:[#allocation2 + $0x60] sm:$0xff] 0.0
    %59 = vst [vmem:[#allocation2 + $0x68] sm:$0xff] 0.0
    %60 = vst [vmem:[#allocation2 + $0x70] sm:$0xff] 0.0
    %61 = vst [vmem:[#allocation2 + $0x78] sm:$0xff] 0.0
  $region13: #{run.1} parent=0 // pred_fallthru
    _
  %s62 = sld [smem:[#allocation5]]
  %p63 = scmp.lt.s32.totalorder 0, %s62
  // Predicated region
  $region14: #{run.1} parent=0 // pred_check
    %p64 = pneg %p63
  $region15: #{run.1} parent=0 // pred_check_branch
    %66 = sbr.rel (%p64) target = $region17
  $region16: #{run.1} parent=0 // pred_region
    %v67 = vld [vmem:[%s38] sm:$0xff]
    %v68 = vld [vmem:[%s38 + $0x8] sm:$0xff]
    %v69 = vld [vmem:[%s38 + $0x10] sm:$0xff]
    %v70 = vld [vmem:[%s38 + $0x18] sm:$0xff]
    %v71 = vld [vmem:[%s38 + $0x20] sm:$0xff]
    %v72 = vld [vmem:[%s38 + $0x28] sm:$0xff]
    %v73 = vld [vmem:[%s38 + $0x30] sm:$0xff]
    %v74 = vld [vmem:[%s38 + $0x38] sm:$0xff]
    %v75 = vld [vmem:[%s38 + $0x40] sm:$0xff]
    %v76 = vld [vmem:[%s38 + $0x48] sm:$0xff]
    %v77 = vld [vmem:[%s38 + $0x50] sm:$0xff]
    %v78 = vld [vmem:[%s38 + $0x58] sm:$0xff]
    %v79 = vld [vmem:[%s38 + $0x60] sm:$0xff]
    %v80 = vld [vmem:[%s38 + $0x68] sm:$0xff]
    %v81 = vld [vmem:[%s38 + $0x70] sm:$0xff]
    %v82 = vld [vmem:[%s38 + $0x78] sm:$0xff]
    %v83 = vld [vmem:[%s2] sm:$0xff]
    %v84 = vld [vmem:[%s2 + $0x8] sm:$0xff]
    %v85 = vld [vmem:[%s2 + $0x10] sm:$0xff]
    %v86 = vld [vmem:[%s2 + $0x18] sm:$0xff]
    %v87 = vld [vmem:[%s2 + $0x20] sm:$0xff]
    %v88 = vld [vmem:[%s2 + $0x28] sm:$0xff]
    %v89 = vld [vmem:[%s2 + $0x30] sm:$0xff]
    %v90 = vld [vmem:[%s2 + $0x38] sm:$0xff]
    %v91 = vld [vmem:[%s2 + $0x40] sm:$0xff]
    %v92 = vld [vmem:[%s2 + $0x48] sm:$0xff]
    %v93 = vld [vmem:[%s2 + $0x50] sm:$0xff]
    %v94 = vld [vmem:[%s2 + $0x58] sm:$0xff]
    %v95 = vld [vmem:[%s2 + $0x60] sm:$0xff]
    %v96 = vld [vmem:[%s2 + $0x68] sm:$0xff]
    %v97 = vld [vmem:[%s2 + $0x70] sm:$0xff]
    %v98 = vld [vmem:[%s2 + $0x78] sm:$0xff]
    %s99 = sadd.s32 0, 0
    %s100 = sld [smem:[#allocation4 + %s99]]
    %s101 = smul.u32 %s100, 128
    %v102 = vlaneseq
    %v103 = vand.u32 %v102, 127
    %v104 = vstv %s101
    %v105 = vadd.s32 %v103, %v104
    %106 = vset.pattern.permute.xlu0 0
    %107 = vperm.xlu0 %106, %v83
    %v108 = vpop.permute.xlu0 %107
    %109 = vset.pattern.permute.xlu0 0
    %110 = vperm.xlu0 %109, %v84
    %v111 = vpop.permute.xlu0 %110
    %112 = vset.pattern.permute.xlu0 0
    %113 = vperm.xlu0 %112, %v85
    %v114 = vpop.permute.xlu0 %113
    %115 = vset.pattern.permute.xlu0 0
    %116 = vperm.xlu0 %115, %v86
    %v117 = vpop.permute.xlu0 %116
    %118 = vset.pattern.permute.xlu0 0
    %119 = vperm.xlu0 %118, %v87
    %v120 = vpop.permute.xlu0 %119
    %121 = vset.pattern.permute.xlu0 0
    %122 = vperm.xlu0 %121, %v88
    %v123 = vpop.permute.xlu0 %122
    %124 = vset.pattern.permute.xlu0 0
    %125 = vperm.xlu0 %124, %v89
    %v126 = vpop.permute.xlu0 %125
    %127 = vset.pattern.permute.xlu0 0
    %128 = vperm.xlu0 %127, %v90
    %v129 = vpop.permute.xlu0 %128
    %130 = vset.pattern.permute.xlu0 0
    %131 = vperm.xlu0 %130, %v91
    %v132 = vpop.permute.xlu0 %131
    %133 = vset.pattern.permute.xlu0 0
    %134 = vperm.xlu0 %133, %v92
    %v135 = vpop.permute.xlu0 %134
    %136 = vset.pattern.permute.xlu0 0
    %137 = vperm.xlu0 %136, %v93
    %v138 = vpop.permute.xlu0 %137
    %139 = vset.pattern.permute.xlu0 0
    %140 = vperm.xlu0 %139, %v94
    %v141 = vpop.permute.xlu0 %140
    %142 = vset.pattern.permute.xlu0 0
    %143 = vperm.xlu0 %142, %v95
    %v144 = vpop.permute.xlu0 %143
    %145 = vset.pattern.permute.xlu0 0
    %146 = vperm.xlu0 %145, %v96
    %v147 = vpop.permute.xlu0 %146
    %148 = vset.pattern.permute.xlu0 0
    %149 = vperm.xlu0 %148, %v97
    %v150 = vpop.permute.xlu0 %149
    %151 = vset.pattern.permute.xlu0 0
    %152 = vperm.xlu0 %151, %v98
    %v153 = vpop.permute.xlu0 %152
    %vm154 = vcmp.eq.s32.totalorder %v108, %v105
    %vm155 = vcmp.eq.s32.totalorder %v111, %v105
    %vm156 = vcmp.eq.s32.totalorder %v114, %v105
    %vm157 = vcmp.eq.s32.totalorder %v117, %v105
    %vm158 = vcmp.eq.s32.totalorder %v120, %v105
    %vm159 = vcmp.eq.s32.totalorder %v123, %v105
    %vm160 = vcmp.eq.s32.totalorder %v126, %v105
    %vm161 = vcmp.eq.s32.totalorder %v129, %v105
    %vm162 = vcmp.eq.s32.totalorder %v132, %v105
    %vm163 = vcmp.eq.s32.totalorder %v135, %v105
    %vm164 = vcmp.eq.s32.totalorder %v138, %v105
    %vm165 = vcmp.eq.s32.totalorder %v141, %v105
    %vm166 = vcmp.eq.s32.totalorder %v144, %v105
    %vm167 = vcmp.eq.s32.totalorder %v147, %v105
    %vm168 = vcmp.eq.s32.totalorder %v150, %v105
    %vm169 = vcmp.eq.s32.totalorder %v153, %v105
    %v170 = vsel %vm154, 1, 0
    %v171 = vsel %vm155, 1, 0
    %v172 = vsel %vm156, 1, 0
    %v173 = vsel %vm157, 1, 0
    %v174 = vsel %vm158, 1, 0
    %v175 = vsel %vm159, 1, 0
    %v176 = vsel %vm160, 1, 0
    %v177 = vsel %vm161, 1, 0
    %v178 = vsel %vm162, 1, 0
    %v179 = vsel %vm163, 1, 0
    %v180 = vsel %vm164, 1, 0
    %v181 = vsel %vm165, 1, 0
    %v182 = vsel %vm166, 1, 0
    %v183 = vsel %vm167, 1, 0
    %v184 = vsel %vm168, 1, 0
    %v185 = vsel %vm169, 1, 0
    %v186 = vcvt.s32.f32 %v170
    %v187 = vcvt.s32.f32 %v171
    %v188 = vcvt.s32.f32 %v172
    %v189 = vcvt.s32.f32 %v173
    %v190 = vcvt.s32.f32 %v174
    %v191 = vcvt.s32.f32 %v175
    %v192 = vcvt.s32.f32 %v176
    %v193 = vcvt.s32.f32 %v177
    %v194 = vcvt.s32.f32 %v178
    %v195 = vcvt.s32.f32 %v179
    %v196 = vcvt.s32.f32 %v180
    %v197 = vcvt.s32.f32 %v181
    %v198 = vcvt.s32.f32 %v182
    %v199 = vcvt.s32.f32 %v183
    %v200 = vcvt.s32.f32 %v184
    %v201 = vcvt.s32.f32 %v185
    %202 = vmatpush.msra.mxu0 %v82
    %203 = vmatpush.msra.mxu0 %v81
    %204 = vmatpush.msra.mxu0 %v80
    %205 = vmatpush.msra.mxu0 %v79
    %206 = vmatpush.msra.mxu0 %v78
    %207 = vmatpush.msra.mxu0 %v77
    %208 = vmatpush.msra.mxu0 %v76
    %209 = vmatpush.msra.mxu0 %v75
    %210 = vmatpush.msra.mxu0 %v74
    %211 = vmatpush.msra.mxu0 %v73
    %212 = vmatpush.msra.mxu0 %v72
    %213 = vmatpush.msra.mxu0 %v71
    %214 = vmatpush.msra.mxu0 %v70
    %215 = vmatpush.msra.mxu0 %v69
    %216 = vmatpush.msra.mxu0 %v68
    %217 = vmatpush.msra.mxu0 %v67
    %218 = vmatmul.f32.gmra.mxu0 %v186
    %v219 = vpop.f32.mrf.mxu0
    %v220 = vadd.f32 0.0, %v219
    %221 = vmatmul.f32.gmra.mxu0 %v187
    %v222 = vpop.f32.mrf.mxu0
    %v223 = vadd.f32 0.0, %v222
    %224 = vmatmul.f32.gmra.mxu0 %v188
    %v225 = vpop.f32.mrf.mxu0
    %v226 = vadd.f32 0.0, %v225
    %227 = vmatmul.f32.gmra.mxu0 %v189
    %v228 = vpop.f32.mrf.mxu0
    %v229 = vadd.f32 0.0, %v228
    %230 = vmatmul.f32.gmra.mxu0 %v190
    %v231 = vpop.f32.mrf.mxu0
    %v232 = vadd.f32 0.0, %v231
    %233 = vmatmul.f32.gmra.mxu0 %v191
    %v234 = vpop.f32.mrf.mxu0
    %v235 = vadd.f32 0.0, %v234
    %236 = vmatmul.f32.gmra.mxu0 %v192
    %v237 = vpop.f32.mrf.mxu0
    %v238 = vadd.f32 0.0, %v237
    %239 = vmatmul.f32.gmra.mxu0 %v193
    %v240 = vpop.f32.mrf.mxu0
    %v241 = vadd.f32 0.0, %v240
    %242 = vmatmul.f32.gmra.mxu0 %v194
    %v243 = vpop.f32.mrf.mxu0
    %v244 = vadd.f32 0.0, %v243
    %245 = vmatmul.f32.gmra.mxu0 %v195
    %v246 = vpop.f32.mrf.mxu0
    %v247 = vadd.f32 0.0, %v246
    %248 = vmatmul.f32.gmra.mxu0 %v196
    %v249 = vpop.f32.mrf.mxu0
    %v250 = vadd.f32 0.0, %v249
    %251 = vmatmul.f32.gmra.mxu0 %v197
    %v252 = vpop.f32.mrf.mxu0
    %v253 = vadd.f32 0.0, %v252
    %254 = vmatmul.f32.gmra.mxu0 %v198
    %v255 = vpop.f32.mrf.mxu0
    %v256 = vadd.f32 0.0, %v255
    %257 = vmatmul.f32.gmra.mxu0 %v199
    %v258 = vpop.f32.mrf.mxu0
    %v259 = vadd.f32 0.0, %v258
    %260 = vmatmul.f32.gmra.mxu0 %v200
    %v261 = vpop.f32.mrf.mxu0
    %v262 = vadd.f32 0.0, %v261
    %263 = vmatmul.f32.gmra.mxu0 %v201
    %v264 = vpop.f32.mrf.mxu0
    %v265 = vadd.f32 0.0, %v264
    %266 = vdwg.mxu0
    %v267 = vld [vmem:[#allocation2] sm:$0xff]
    %v268 = vld [vmem:[#allocation2 + $0x8] sm:$0xff]
    %v269 = vld [vmem:[#allocation2 + $0x10] sm:$0xff]
    %v270 = vld [vmem:[#allocation2 + $0x18] sm:$0xff]
    %v271 = vld [vmem:[#allocation2 + $0x20] sm:$0xff]
    %v272 = vld [vmem:[#allocation2 + $0x28] sm:$0xff]
    %v273 = vld [vmem:[#allocation2 + $0x30] sm:$0xff]
    %v274 = vld [vmem:[#allocation2 + $0x38] sm:$0xff]
    %v275 = vld [vmem:[#allocation2 + $0x40] sm:$0xff]
    %v276 = vld [vmem:[#allocation2 + $0x48] sm:$0xff]
    %v277 = vld [vmem:[#allocation2 + $0x50] sm:$0xff]
    %v278 = vld [vmem:[#allocation2 + $0x58] sm:$0xff]
    %v279 = vld [vmem:[#allocation2 + $0x60] sm:$0xff]
    %v280 = vld [vmem:[#allocation2 + $0x68] sm:$0xff]
    %v281 = vld [vmem:[#allocation2 + $0x70] sm:$0xff]
    %v282 = vld [vmem:[#allocation2 + $0x78] sm:$0xff]
    %v283 = vmax.f32 %v267, %v220
    %v284 = vmax.f32 %v268, %v223
    %v285 = vmax.f32 %v269, %v226
    %v286 = vmax.f32 %v270, %v229
    %v287 = vmax.f32 %v271, %v232
    %v288 = vmax.f32 %v272, %v235
    %v289 = vmax.f32 %v273, %v238
    %v290 = vmax.f32 %v274, %v241
    %v291 = vmax.f32 %v275, %v244
    %v292 = vmax.f32 %v276, %v247
    %v293 = vmax.f32 %v277, %v250
    %v294 = vmax.f32 %v278, %v253
    %v295 = vmax.f32 %v279, %v256
    %v296 = vmax.f32 %v280, %v259
    %v297 = vmax.f32 %v281, %v262
    %v298 = vmax.f32 %v282, %v265
    %299 = vst [vmem:[#allocation2] sm:$0xff] %v283
    %300 = vst [vmem:[#allocation2 + $0x8] sm:$0xff] %v284
    %301 = vst [vmem:[#allocation2 + $0x10] sm:$0xff] %v285
    %302 = vst [vmem:[#allocation2 + $0x18] sm:$0xff] %v286
    %303 = vst [vmem:[#allocation2 + $0x20] sm:$0xff] %v287
    %304 = vst [vmem:[#allocation2 + $0x28] sm:$0xff] %v288
    %305 = vst [vmem:[#allocation2 + $0x30] sm:$0xff] %v289
    %306 = vst [vmem:[#allocation2 + $0x38] sm:$0xff] %v290
    %307 = vst [vmem:[#allocation2 + $0x40] sm:$0xff] %v291
    %308 = vst [vmem:[#allocation2 + $0x48] sm:$0xff] %v292
    %309 = vst [vmem:[#allocation2 + $0x50] sm:$0xff] %v293
    %310 = vst [vmem:[#allocation2 + $0x58] sm:$0xff] %v294
    %311 = vst [vmem:[#allocation2 + $0x60] sm:$0xff] %v295
    %312 = vst [vmem:[#allocation2 + $0x68] sm:$0xff] %v296
    %313 = vst [vmem:[#allocation2 + $0x70] sm:$0xff] %v297
    %314 = vst [vmem:[#allocation2 + $0x78] sm:$0xff] %v298
    %315 = vset.pattern.permute.xlu0 1
    %316 = vperm.xlu0 %315, %v83
    %v317 = vpop.permute.xlu0 %316
    %318 = vset.pattern.permute.xlu0 1
    %319 = vperm.xlu0 %318, %v84
    %v320 = vpop.permute.xlu0 %319
    %321 = vset.pattern.permute.xlu0 1
    %322 = vperm.xlu0 %321, %v85
    %v323 = vpop.permute.xlu0 %322
    %324 = vset.pattern.permute.xlu0 1
    %325 = vperm.xlu0 %324, %v86
    %v326 = vpop.permute.xlu0 %325
    %327 = vset.pattern.permute.xlu0 1
    %328 = vperm.xlu0 %327, %v87
    %v329 = vpop.permute.xlu0 %328
    %330 = vset.pattern.permute.xlu0 1
    %331 = vperm.xlu0 %330, %v88
    %v332 = vpop.permute.xlu0 %331
    %333 = vset.pattern.permute.xlu0 1
    %334 = vperm.xlu0 %333, %v89
    %v335 = vpop.permute.xlu0 %334
    %336 = vset.pattern.permute.xlu0 1
    %337 = vperm.xlu0 %336, %v90
    %v338 = vpop.permute.xlu0 %337
    %339 = vset.pattern.permute.xlu0 1
    %340 = vperm.xlu0 %339, %v91
    %v341 = vpop.permute.xlu0 %340
    %342 = vset.pattern.permute.xlu0 1
    %343 = vperm.xlu0 %342, %v92
    %v344 = vpop.permute.xlu0 %343
    %345 = vset.pattern.permute.xlu0 1
    %346 = vperm.xlu0 %345, %v93
    %v347 = vpop.permute.xlu0 %346
    %348 = vset.pattern.permute.xlu0 1
    %349 = vperm.xlu0 %348, %v94
    %v350 = vpop.permute.xlu0 %349
    %351 = vset.pattern.permute.xlu0 1
    %352 = vperm.xlu0 %351, %v95
    %v353 = vpop.permute.xlu0 %352
    %354 = vset.pattern.permute.xlu0 1
    %355 = vperm.xlu0 %354, %v96
    %v356 = vpop.permute.xlu0 %355
    %357 = vset.pattern.permute.xlu0 1
    %358 = vperm.xlu0 %357, %v97
    %v359 = vpop.permute.xlu0 %358
    %360 = vset.pattern.permute.xlu0 1
    %361 = vperm.xlu0 %360, %v98
    %v362 = vpop.permute.xlu0 %361
    %vm363 = vcmp.eq.s32.totalorder %v317, %v105
    %vm364 = vcmp.eq.s32.totalorder %v320, %v105
    %vm365 = vcmp.eq.s32.totalorder %v323, %v105
    %vm366 = vcmp.eq.s32.totalorder %v326, %v105
    %vm367 = vcmp.eq.s32.totalorder %v329, %v105
    %vm368 = vcmp.eq.s32.totalorder %v332, %v105
    %vm369 = vcmp.eq.s32.totalorder %v335, %v105
    %vm370 = vcmp.eq.s32.totalorder %v338, %v105
    %vm371 = vcmp.eq.s32.totalorder %v341, %v105
    %vm372 = vcmp.eq.s32.totalorder %v344, %v105
    %vm373 = vcmp.eq.s32.totalorder %v347, %v105
    %vm374 = vcmp.eq.s32.totalorder %v350, %v105
    %vm375 = vcmp.eq.s32.totalorder %v353, %v105
    %vm376 = vcmp.eq.s32.totalorder %v356, %v105
    %vm377 = vcmp.eq.s32.totalorder %v359, %v105
    %vm378 = vcmp.eq.s32.totalorder %v362, %v105
    %v379 = vsel %vm363, 1, 0
    %v380 = vsel %vm364, 1, 0
    %v381 = vsel %vm365, 1, 0
    %v382 = vsel %vm366, 1, 0
    %v383 = vsel %vm367, 1, 0
    %v384 = vsel %vm368, 1, 0
    %v385 = vsel %vm369, 1, 0
    %v386 = vsel %vm370, 1, 0
    %v387 = vsel %vm371, 1, 0
    %v388 = vsel %vm372, 1, 0
    %v389 = vsel %vm373, 1, 0
    %v390 = vsel %vm374, 1, 0
    %v391 = vsel %vm375, 1, 0
    %v392 = vsel %vm376, 1, 0
    %v393 = vsel %vm377, 1, 0
    %v394 = vsel %vm378, 1, 0
    %v395 = vcvt.s32.f32 %v379
    %v396 = vcvt.s32.f32 %v380
    %v397 = vcvt.s32.f32 %v381
    %v398 = vcvt.s32.f32 %v382
    %v399 = vcvt.s32.f32 %v383
    %v400 = vcvt.s32.f32 %v384
    %v401 = vcvt.s32.f32 %v385
    %v402 = vcvt.s32.f32 %v386
    %v403 = vcvt.s32.f32 %v387
    %v404 = vcvt.s32.f32 %v388
    %v405 = vcvt.s32.f32 %v389
    %v406 = vcvt.s32.f32 %v390
    %v407 = vcvt.s32.f32 %v391
    %v408 = vcvt.s32.f32 %v392
    %v409 = vcvt.s32.f32 %v393
    %v410 = vcvt.s32.f32 %v394
    %411 = vmatpush.msra.mxu0 %v82
    %412 = vmatpush.msra.mxu0 %v81
    %413 = vmatpush.msra.mxu0 %v80
    %414 = vmatpush.msra.mxu0 %v79
    %415 = vmatpush.msra.mxu0 %v78
    %416 = vmatpush.msra.mxu0 %v77
    %417 = vmatpush.msra.mxu0 %v76
    %418 = vmatpush.msra.mxu0 %v75
    %419 = vmatpush.msra.mxu0 %v74
    %420 = vmatpush.msra.mxu0 %v73
    %421 = vmatpush.msra.mxu0 %v72
    %422 = vmatpush.msra.mxu0 %v71
    %423 = vmatpush.msra.mxu0 %v70
    %424 = vmatpush.msra.mxu0 %v69
    %425 = vmatpush.msra.mxu0 %v68
    %426 = vmatpush.msra.mxu0 %v67
    %427 = vmatmul.f32.gmra.mxu0 %v395
    %v428 = vpop.f32.mrf.mxu0
    %v429 = vadd.f32 0.0, %v428
    %430 = vmatmul.f32.gmra.mxu0 %v396
    %v431 = vpop.f32.mrf.mxu0
    %v432 = vadd.f32 0.0, %v431
    %433 = vmatmul.f32.gmra.mxu0 %v397
    %v434 = vpop.f32.mrf.mxu0
    %v435 = vadd.f32 0.0, %v434
    %436 = vmatmul.f32.gmra.mxu0 %v398
    %v437 = vpop.f32.mrf.mxu0
    %v438 = vadd.f32 0.0, %v437
    %439 = vmatmul.f32.gmra.mxu0 %v399
    %v440 = vpop.f32.mrf.mxu0
    %v441 = vadd.f32 0.0, %v440
    %442 = vmatmul.f32.gmra.mxu0 %v400
    %v443 = vpop.f32.mrf.mxu0
    %v444 = vadd.f32 0.0, %v443
    %445 = vmatmul.f32.gmra.mxu0 %v401
    %v446 = vpop.f32.mrf.mxu0
    %v447 = vadd.f32 0.0, %v446
    %448 = vmatmul.f32.gmra.mxu0 %v402
    %v449 = vpop.f32.mrf.mxu0
    %v450 = vadd.f32 0.0, %v449
    %451 = vmatmul.f32.gmra.mxu0 %v403
    %v452 = vpop.f32.mrf.mxu0
    %v453 = vadd.f32 0.0, %v452
    %454 = vmatmul.f32.gmra.mxu0 %v404
    %v455 = vpop.f32.mrf.mxu0
    %v456 = vadd.f32 0.0, %v455
    %457 = vmatmul.f32.gmra.mxu0 %v405
    %v458 = vpop.f32.mrf.mxu0
    %v459 = vadd.f32 0.0, %v458
    %460 = vmatmul.f32.gmra.mxu0 %v406
    %v461 = vpop.f32.mrf.mxu0
    %v462 = vadd.f32 0.0, %v461
    %463 = vmatmul.f32.gmra.mxu0 %v407
    %v464 = vpop.f32.mrf.mxu0
    %v465 = vadd.f32 0.0, %v464
    %466 = vmatmul.f32.gmra.mxu0 %v408
    %v467 = vpop.f32.mrf.mxu0
    %v468 = vadd.f32 0.0, %v467
    %469 = vmatmul.f32.gmra.mxu0 %v409
    %v470 = vpop.f32.mrf.mxu0
    %v471 = vadd.f32 0.0, %v470
    %472 = vmatmul.f32.gmra.mxu0 %v410
    %v473 = vpop.f32.mrf.mxu0
    %v474 = vadd.f32 0.0, %v473
    %475 = vdwg.mxu0
    %v476 = vld [vmem:[#allocation2] sm:$0xff]
    %v477 = vld [vmem:[#allocation2 + $0x8] sm:$0xff]
    %v478 = vld [vmem:[#allocation2 + $0x10] sm:$0xff]
    %v479 = vld [vmem:[#allocation2 + $0x18] sm:$0xff]
    %v480 = vld [vmem:[#allocation2 + $0x20] sm:$0xff]
    %v481 = vld [vmem:[#allocation2 + $0x28] sm:$0xff]
    %v482 = vld [vmem:[#allocation2 + $0x30] sm:$0xff]
    %v483 = vld [vmem:[#allocation2 + $0x38] sm:$0xff]
    %v484 = vld [vmem:[#allocation2 + $0x40] sm:$0xff]
    %v485 = vld [vmem:[#allocation2 + $0x48] sm:$0xff]
    %v486 = vld [vmem:[#allocation2 + $0x50] sm:$0xff]
    %v487 = vld [vmem:[#allocation2 + $0x58] sm:$0xff]
    %v488 = vld [vmem:[#allocation2 + $0x60] sm:$0xff]
    %v489 = vld [vmem:[#allocation2 + $0x68] sm:$0xff]
    %v490 = vld [vmem:[#allocation2 + $0x70] sm:$0xff]
    %v491 = vld [vmem:[#allocation2 + $0x78] sm:$0xff]
    %v492 = vmax.f32 %v476, %v429
    %v493 = vmax.f32 %v477, %v432
    %v494 = vmax.f32 %v478, %v435
    %v495 = vmax.f32 %v479, %v438
    %v496 = vmax.f32 %v480, %v441
    %v497 = vmax.f32 %v481, %v444
    %v498 = vmax.f32 %v482, %v447
    %v499 = vmax.f32 %v483, %v450
    %v500 = vmax.f32 %v484, %v453
    %v501 = vmax.f32 %v485, %v456
    %v502 = vmax.f32 %v486, %v459
    %v503 = vmax.f32 %v487, %v462
    %v504 = vmax.f32 %v488, %v465
    %v505 = vmax.f32 %v489, %v468
    %v506 = vmax.f32 %v490, %v471
    %v507 = vmax.f32 %v491, %v474
    %508 = vst [vmem:[#allocation2] sm:$0xff] %v492
    %509 = vst [vmem:[#allocation2 + $0x8] sm:$0xff] %v493
    %510 = vst [vmem:[#allocation2 + $0x10] sm:$0xff] %v494
    %511 = vst [vmem:[#allocation2 + $0x18] sm:$0xff] %v495
    %512 = vst [vmem:[#allocation2 + $0x20] sm:$0xff] %v496
    %513 = vst [vmem:[#allocation2 + $0x28] sm:$0xff] %v497
    %514 = vst [vmem:[#allocation2 + $0x30] sm:$0xff] %v498
    %515 = vst [vmem:[#allocation2 + $0x38] sm:$0xff] %v499
    %516 = vst [vmem:[#allocation2 + $0x40] sm:$0xff] %v500
    %517 = vst [vmem:[#allocation2 + $0x48] sm:$0xff] %v501
    %518 = vst [vmem:[#allocation2 + $0x50] sm:$0xff] %v502
    %519 = vst [vmem:[#allocation2 + $0x58] sm:$0xff] %v503
    %520 = vst [vmem:[#allocation2 + $0x60] sm:$0xff] %v504
    %521 = vst [vmem:[#allocation2 + $0x68] sm:$0xff] %v505
    %522 = vst [vmem:[#allocation2 + $0x70] sm:$0xff] %v506
    %523 = vst [vmem:[#allocation2 + $0x78] sm:$0xff] %v507
    %524 = vset.pattern.permute.xlu0 2
    %525 = vperm.xlu0 %524, %v83
    %v526 = vpop.permute.xlu0 %525
    %527 = vset.pattern.permute.xlu0 2
    %528 = vperm.xlu0 %527, %v84
    %v529 = vpop.permute.xlu0 %528
    %530 = vset.pattern.permute.xlu0 2
    %531 = vperm.xlu0 %530, %v85
    %v532 = vpop.permute.xlu0 %531
    %533 = vset.pattern.permute.xlu0 2
    %534 = vperm.xlu0 %533, %v86
    %v535 = vpop.permute.xlu0 %534
    %536 = vset.pattern.permute.xlu0 2
    %537 = vperm.xlu0 %536, %v87
    %v538 = vpop.permute.xlu0 %537
    %539 = vset.pattern.permute.xlu0 2
    %540 = vperm.xlu0 %539, %v88
    %v541 = vpop.permute.xlu0 %540
    %542 = vset.pattern.permute.xlu0 2
    %543 = vperm.xlu0 %542, %v89
    %v544 = vpop.permute.xlu0 %543
    %545 = vset.pattern.permute.xlu0 2
    %546 = vperm.xlu0 %545, %v90
    %v547 = vpop.permute.xlu0 %546
    %548 = vset.pattern.permute.xlu0 2
    %549 = vperm.xlu0 %548, %v91
    %v550 = vpop.permute.xlu0 %549
    %551 = vset.pattern.permute.xlu0 2
    %552 = vperm.xlu0 %551, %v92
    %v553 = vpop.permute.xlu0 %552
    %554 = vset.pattern.permute.xlu0 2
    %555 = vperm.xlu0 %554, %v93
    %v556 = vpop.permute.xlu0 %555
    %557 = vset.pattern.permute.xlu0 2
    %558 = vperm.xlu0 %557, %v94
    %v559 = vpop.permute.xlu0 %558
    %560 = vset.pattern.permute.xlu0 2
    %561 = vperm.xlu0 %560, %v95
    %v562 = vpop.permute.xlu0 %561
    %563 = vset.pattern.permute.xlu0 2
    %564 = vperm.xlu0 %563, %v96
    %v565 = vpop.permute.xlu0 %564
    %566 = vset.pattern.permute.xlu0 2
    %567 = vperm.xlu0 %566, %v97
    %v568 = vpop.permute.xlu0 %567
    %569 = vset.pattern.permute.xlu0 2
    %570 = vperm.xlu0 %569, %v98
    %v571 = vpop.permute.xlu0 %570
    %vm572 = vcmp.eq.s32.totalorder %v526, %v105
    %vm573 = vcmp.eq.s32.totalorder %v529, %v105
    %vm574 = vcmp.eq.s32.totalorder %v532, %v105
    %vm575 = vcmp.eq.s32.totalorder %v535, %v105
    %vm576 = vcmp.eq.s32.totalorder %v538, %v105
    %vm577 = vcmp.eq.s32.totalorder %v541, %v105
    %vm578 = vcmp.eq.s32.totalorder %v544, %v105
    %vm579 = vcmp.eq.s32.totalorder %v547, %v105
    %vm580 = vcmp.eq.s32.totalorder %v550, %v105
    %vm581 = vcmp.eq.s32.totalorder %v553, %v105
    %vm582 = vcmp.eq.s32.totalorder %v556, %v105
    %vm583 = vcmp.eq.s32.totalorder %v559, %v105
    %vm584 = vcmp.eq.s32.totalorder %v562, %v105
    %vm585 = vcmp.eq.s32.totalorder %v565, %v105
    %vm586 = vcmp.eq.s32.totalorder %v568, %v105
    %vm587 = vcmp.eq.s32.totalorder %v571, %v105
    %v588 = vsel %vm572, 1, 0
    %v589 = vsel %vm573, 1, 0
    %v590 = vsel %vm574, 1, 0
    %v591 = vsel %vm575, 1, 0
    %v592 = vsel %vm576, 1, 0
    %v593 = vsel %vm577, 1, 0
    %v594 = vsel %vm578, 1, 0
    %v595 = vsel %vm579, 1, 0
    %v596 = vsel %vm580, 1, 0
    %v597 = vsel %vm581, 1, 0
    %v598 = vsel %vm582, 1, 0
    %v599 = vsel %vm583, 1, 0
    %v600 = vsel %vm584, 1, 0
    %v601 = vsel %vm585, 1, 0
    %v602 = vsel %vm586, 1, 0
    %v603 = vsel %vm587, 1, 0
    %v604 = vcvt.s32.f32 %v588
    %v605 = vcvt.s32.f32 %v589
    %v606 = vcvt.s32.f32 %v590
    %v607 = vcvt.s32.f32 %v591
    %v608 = vcvt.s32.f32 %v592
    %v609 = vcvt.s32.f32 %v593
    %v610 = vcvt.s32.f32 %v594
    %v611 = vcvt.s32.f32 %v595
    %v612 = vcvt.s32.f32 %v596
    %v613 = vcvt.s32.f32 %v597
    %v614 = vcvt.s32.f32 %v598
    %v615 = vcvt.s32.f32 %v599
    %v616 = vcvt.s32.f32 %v600
    %v617 = vcvt.s32.f32 %v601
    %v618 = vcvt.s32.f32 %v602
    %v619 = vcvt.s32.f32 %v603
    %620 = vmatpush.msra.mxu0 %v82
    %621 = vmatpush.msra.mxu0 %v81
    %622 = vmatpush.msra.mxu0 %v80
    %623 = vmatpush.msra.mxu0 %v79
    %624 = vmatpush.msra.mxu0 %v78
    %625 = vmatpush.msra.mxu0 %v77
    %626 = vmatpush.msra.mxu0 %v76
    %627 = vmatpush.msra.mxu0 %v75
    %628 = vmatpush.msra.mxu0 %v74
    %629 = vmatpush.msra.mxu0 %v73
    %630 = vmatpush.msra.mxu0 %v72
    %631 = vmatpush.msra.mxu0 %v71
    %632 = vmatpush.msra.mxu0 %v70
    %633 = vmatpush.msra.mxu0 %v69
    %634 = vmatpush.msra.mxu0 %v68
    %635 = vmatpush.msra.mxu0 %v67
    %636 = vmatmul.f32.gmra.mxu0 %v604
    %v637 = vpop.f32.mrf.mxu0
    %v638 = vadd.f32 0.0, %v637
    %639 = vmatmul.f32.gmra.mxu0 %v605
    %v640 = vpop.f32.mrf.mxu0
    %v641 = vadd.f32 0.0, %v640
    %642 = vmatmul.f32.gmra.mxu0 %v606
    %v643 = vpop.f32.mrf.mxu0
    %v644 = vadd.f32 0.0, %v643
    %645 = vmatmul.f32.gmra.mxu0 %v607
    %v646 = vpop.f32.mrf.mxu0
    %v647 = vadd.f32 0.0, %v646
    %648 = vmatmul.f32.gmra.mxu0 %v608
    %v649 = vpop.f32.mrf.mxu0
    %v650 = vadd.f32 0.0, %v649
    %651 = vmatmul.f32.gmra.mxu0 %v609
    %v652 = vpop.f32.mrf.mxu0
    %v653 = vadd.f32 0.0, %v652
    %654 = vmatmul.f32.gmra.mxu0 %v610
    %v655 = vpop.f32.mrf.mxu0
    %v656 = vadd.f32 0.0, %v655
    %657 = vmatmul.f32.gmra.mxu0 %v611
    %v658 = vpop.f32.mrf.mxu0
    %v659 = vadd.f32 0.0, %v658
    %660 = vmatmul.f32.gmra.mxu0 %v612
    %v661 = vpop.f32.mrf.mxu0
    %v662 = vadd.f32 0.0, %v661
    %663 = vmatmul.f32.gmra.mxu0 %v613
    %v664 = vpop.f32.mrf.mxu0
    %v665 = vadd.f32 0.0, %v664
    %666 = vmatmul.f32.gmra.mxu0 %v614
    %v667 = vpop.f32.mrf.mxu0
    %v668 = vadd.f32 0.0, %v667
    %669 = vmatmul.f32.gmra.mxu0 %v615
    %v670 = vpop.f32.mrf.mxu0
    %v671 = vadd.f32 0.0, %v670
    %672 = vmatmul.f32.gmra.mxu0 %v616
    %v673 = vpop.f32.mrf.mxu0
    %v674 = vadd.f32 0.0, %v673
    %675 = vmatmul.f32.gmra.mxu0 %v617
    %v676 = vpop.f32.mrf.mxu0
    %v677 = vadd.f32 0.0, %v676
    %678 = vmatmul.f32.gmra.mxu0 %v618
    %v679 = vpop.f32.mrf.mxu0
    %v680 = vadd.f32 0.0, %v679
    %681 = vmatmul.f32.gmra.mxu0 %v619
    %v682 = vpop.f32.mrf.mxu0
    %v683 = vadd.f32 0.0, %v682
    %684 = vdwg.mxu0
    %v685 = vld [vmem:[#allocation2] sm:$0xff]
    %v686 = vld [vmem:[#allocation2 + $0x8] sm:$0xff]
    %v687 = vld [vmem:[#allocation2 + $0x10] sm:$0xff]
    %v688 = vld [vmem:[#allocation2 + $0x18] sm:$0xff]
    %v689 = vld [vmem:[#allocation2 + $0x20] sm:$0xff]
    %v690 = vld [vmem:[#allocation2 + $0x28] sm:$0xff]
    %v691 = vld [vmem:[#allocation2 + $0x30] sm:$0xff]
    %v692 = vld [vmem:[#allocation2 + $0x38] sm:$0xff]
    %v693 = vld [vmem:[#allocation2 + $0x40] sm:$0xff]
    %v694 = vld [vmem:[#allocation2 + $0x48] sm:$0xff]
    %v695 = vld [vmem:[#allocation2 + $0x50] sm:$0xff]
    %v696 = vld [vmem:[#allocation2 + $0x58] sm:$0xff]
    %v697 = vld [vmem:[#allocation2 + $0x60] sm:$0xff]
    %v698 = vld [vmem:[#allocation2 + $0x68] sm:$0xff]
    %v699 = vld [vmem:[#allocation2 + $0x70] sm:$0xff]
    %v700 = vld [vmem:[#allocation2 + $0x78] sm:$0xff]
    %v701 = vmax.f32 %v685, %v638
    %v702 = vmax.f32 %v686, %v641
    %v703 = vmax.f32 %v687, %v644
    %v704 = vmax.f32 %v688, %v647
    %v705 = vmax.f32 %v689, %v650
    %v706 = vmax.f32 %v690, %v653
    %v707 = vmax.f32 %v691, %v656
    %v708 = vmax.f32 %v692, %v659
    %v709 = vmax.f32 %v693, %v662
    %v710 = vmax.f32 %v694, %v665
    %v711 = vmax.f32 %v695, %v668
    %v712 = vmax.f32 %v696, %v671
    %v713 = vmax.f32 %v697, %v674
    %v714 = vmax.f32 %v698, %v677
    %v715 = vmax.f32 %v699, %v680
    %v716 = vmax.f32 %v700, %v683
    %717 = vst [vmem:[#allocation2] sm:$0xff] %v701
    %718 = vst [vmem:[#allocation2 + $0x8] sm:$0xff] %v702
    %719 = vst [vmem:[#allocation2 + $0x10] sm:$0xff] %v703
    %720 = vst [vmem:[#allocation2 + $0x18] sm:$0xff] %v704
    %721 = vst [vmem:[#allocation2 + $0x20] sm:$0xff] %v705
    %722 = vst [vmem:[#allocation2 + $0x28] sm:$0xff] %v706
    %723 = vst [vmem:[#allocation2 + $0x30] sm:$0xff] %v707
    %724 = vst [vmem:[#allocation2 + $0x38] sm:$0xff] %v708
    %725 = vst [vmem:[#allocation2 + $0x40] sm:$0xff] %v709
    %726 = vst [vmem:[#allocation2 + $0x48] sm:$0xff] %v710
    %727 = vst [vmem:[#allocation2 + $0x50] sm:$0xff] %v711
    %728 = vst [vmem:[#allocation2 + $0x58] sm:$0xff] %v712
    %729 = vst [vmem:[#allocation2 + $0x60] sm:$0xff] %v713
    %730 = vst [vmem:[#allocation2 + $0x68] sm:$0xff] %v714
    %731 = vst [vmem:[#allocation2 + $0x70] sm:$0xff] %v715
    %732 = vst [vmem:[#allocation2 + $0x78] sm:$0xff] %v716
    %733 = vset.pattern.permute.xlu0 3
    %734 = vperm.xlu0 %733, %v83
    %v735 = vpop.permute.xlu0 %734
    %736 = vset.pattern.permute.xlu0 3
    %737 = vperm.xlu0 %736, %v84
    %v738 = vpop.permute.xlu0 %737
    %739 = vset.pattern.permute.xlu0 3
    %740 = vperm.xlu0 %739, %v85
    %v741 = vpop.permute.xlu0 %740
    %742 = vset.pattern.permute.xlu0 3
    %743 = vperm.xlu0 %742, %v86
    %v744 = vpop.permute.xlu0 %743
    %745 = vset.pattern.permute.xlu0 3
    %746 = vperm.xlu0 %745, %v87
    %v747 = vpop.permute.xlu0 %746
    %748 = vset.pattern.permute.xlu0 3
    %749 = vperm.xlu0 %748, %v88
    %v750 = vpop.permute.xlu0 %749
    %751 = vset.pattern.permute.xlu0 3
    %752 = vperm.xlu0 %751, %v89
    %v753 = vpop.permute.xlu0 %752
    %754 = vset.pattern.permute.xlu0 3
    %755 = vperm.xlu0 %754, %v90
    %v756 = vpop.permute.xlu0 %755
    %757 = vset.pattern.permute.xlu0 3
    %758 = vperm.xlu0 %757, %v91
    %v759 = vpop.permute.xlu0 %758
    %760 = vset.pattern.permute.xlu0 3
    %761 = vperm.xlu0 %760, %v92
    %v762 = vpop.permute.xlu0 %761
    %763 = vset.pattern.permute.xlu0 3
    %764 = vperm.xlu0 %763, %v93
    %v765 = vpop.permute.xlu0 %764
    %766 = vset.pattern.permute.xlu0 3
    %767 = vperm.xlu0 %766, %v94
    %v768 = vpop.permute.xlu0 %767
    %769 = vset.pattern.permute.xlu0 3
    %770 = vperm.xlu0 %769, %v95
    %v771 = vpop.permute.xlu0 %770
    %772 = vset.pattern.permute.xlu0 3
    %773 = vperm.xlu0 %772, %v96
    %v774 = vpop.permute.xlu0 %773
    %775 = vset.pattern.permute.xlu0 3
    %776 = vperm.xlu0 %775, %v97
    %v777 = vpop.permute.xlu0 %776
    %778 = vset.pattern.permute.xlu0 3
    %779 = vperm.xlu0 %778, %v98
    %v780 = vpop.permute.xlu0 %779
    %vm781 = vcmp.eq.s32.totalorder %v735, %v105
    %vm782 = vcmp.eq.s32.totalorder %v738, %v105
    %vm783 = vcmp.eq.s32.totalorder %v741, %v105
    %vm784 = vcmp.eq.s32.totalorder %v744, %v105
    %vm785 = vcmp.eq.s32.totalorder %v747, %v105
    %vm786 = vcmp.eq.s32.totalorder %v750, %v105
    %vm787 = vcmp.eq.s32.totalorder %v753, %v105
    %vm788 = vcmp.eq.s32.totalorder %v756, %v105
    %vm789 = vcmp.eq.s32.totalorder %v759, %v105
    %vm790 = vcmp.eq.s32.totalorder %v762, %v105
    %vm791 = vcmp.eq.s32.totalorder %v765, %v105
    %vm792 = vcmp.eq.s32.totalorder %v768, %v105
    %vm793 = vcmp.eq.s32.totalorder %v771, %v105
    %vm794 = vcmp.eq.s32.totalorder %v774, %v105
    %vm795 = vcmp.eq.s32.totalorder %v777, %v105
    %vm796 = vcmp.eq.s32.totalorder %v780, %v105
    %v797 = vsel %vm781, 1, 0
    %v798 = vsel %vm782, 1, 0
    %v799 = vsel %vm783, 1, 0
    %v800 = vsel %vm784, 1, 0
    %v801 = vsel %vm785, 1, 0
    %v802 = vsel %vm786, 1, 0
    %v803 = vsel %vm787, 1, 0
    %v804 = vsel %vm788, 1, 0
    %v805 = vsel %vm789, 1, 0
    %v806 = vsel %vm790, 1, 0
    %v807 = vsel %vm791, 1, 0
    %v808 = vsel %vm792, 1, 0
    %v809 = vsel %vm793, 1, 0
    %v810 = vsel %vm794, 1, 0
    %v811 = vsel %vm795, 1, 0
    %v812 = vsel %vm796, 1, 0
    %v813 = vcvt.s32.f32 %v797
    %v814 = vcvt.s32.f32 %v798
    %v815 = vcvt.s32.f32 %v799
    %v816 = vcvt.s32.f32 %v800
    %v817 = vcvt.s32.f32 %v801
    %v818 = vcvt.s32.f32 %v802
    %v819 = vcvt.s32.f32 %v803
    %v820 = vcvt.s32.f32 %v804
    %v821 = vcvt.s32.f32 %v805
    %v822 = vcvt.s32.f32 %v806
    %v823 = vcvt.s32.f32 %v807
    %v824 = vcvt.s32.f32 %v808
    %v825 = vcvt.s32.f32 %v809
    %v826 = vcvt.s32.f32 %v810
    %v827 = vcvt.s32.f32 %v811
    %v828 = vcvt.s32.f32 %v812
    %829 = vmatpush.msra.mxu0 %v82
    %830 = vmatpush.msra.mxu0 %v81
    %831 = vmatpush.msra.mxu0 %v80
    %832 = vmatpush.msra.mxu0 %v79
    %833 = vmatpush.msra.mxu0 %v78
    %834 = vmatpush.msra.mxu0 %v77
    %835 = vmatpush.msra.mxu0 %v76
    %836 = vmatpush.msra.mxu0 %v75
    %837 = vmatpush.msra.mxu0 %v74
    %838 = vmatpush.msra.mxu0 %v73
    %839 = vmatpush.msra.mxu0 %v72
    %840 = vmatpush.msra.mxu0 %v71
    %841 = vmatpush.msra.mxu0 %v70
    %842 = vmatpush.msra.mxu0 %v69
    %843 = vmatpush.msra.mxu0 %v68
    %844 = vmatpush.msra.mxu0 %v67
    %845 = vmatmul.f32.gmra.mxu0 %v813
    %v846 = vpop.f32.mrf.mxu0
    %v847 = vadd.f32 0.0, %v846
    %848 = vmatmul.f32.gmra.mxu0 %v814
    %v849 = vpop.f32.mrf.mxu0
    %v850 = vadd.f32 0.0, %v849
    %851 = vmatmul.f32.gmra.mxu0 %v815
    %v852 = vpop.f32.mrf.mxu0
    %v853 = vadd.f32 0.0, %v852
    %854 = vmatmul.f32.gmra.mxu0 %v816
    %v855 = vpop.f32.mrf.mxu0
    %v856 = vadd.f32 0.0, %v855
    %857 = vmatmul.f32.gmra.mxu0 %v817
    %v858 = vpop.f32.mrf.mxu0
    %v859 = vadd.f32 0.0, %v858
    %860 = vmatmul.f32.gmra.mxu0 %v818
    %v861 = vpop.f32.mrf.mxu0
    %v862 = vadd.f32 0.0, %v861
    %863 = vmatmul.f32.gmra.mxu0 %v819
    %v864 = vpop.f32.mrf.mxu0
    %v865 = vadd.f32 0.0, %v864
    %866 = vmatmul.f32.gmra.mxu0 %v820
    %v867 = vpop.f32.mrf.mxu0
    %v868 = vadd.f32 0.0, %v867
    %869 = vmatmul.f32.gmra.mxu0 %v821
    %v870 = vpop.f32.mrf.mxu0
    %v871 = vadd.f32 0.0, %v870
    %872 = vmatmul.f32.gmra.mxu0 %v822
    %v873 = vpop.f32.mrf.mxu0
    %v874 = vadd.f32 0.0, %v873
    %875 = vmatmul.f32.gmra.mxu0 %v823
    %v876 = vpop.f32.mrf.mxu0
    %v877 = vadd.f32 0.0, %v876
    %878 = vmatmul.f32.gmra.mxu0 %v824
    %v879 = vpop.f32.mrf.mxu0
    %v880 = vadd.f32 0.0, %v879
    %881 = vmatmul.f32.gmra.mxu0 %v825
    %v882 = vpop.f32.mrf.mxu0
    %v883 = vadd.f32 0.0, %v882
    %884 = vmatmul.f32.gmra.mxu0 %v826
    %v885 = vpop.f32.mrf.mxu0
    %v886 = vadd.f32 0.0, %v885
    %887 = vmatmul.f32.gmra.mxu0 %v827
    %v888 = vpop.f32.mrf.mxu0
    %v889 = vadd.f32 0.0, %v888
    %890 = vmatmul.f32.gmra.mxu0 %v828
    %v891 = vpop.f32.mrf.mxu0
    %v892 = vadd.f32 0.0, %v891
    %893 = vdwg.mxu0
    %v894 = vld [vmem:[#allocation2] sm:$0xff]
    %v895 = vld [vmem:[#allocation2 + $0x8] sm:$0xff]
    %v896 = vld [vmem:[#allocation2 + $0x10] sm:$0xff]
    %v897 = vld [vmem:[#allocation2 + $0x18] sm:$0xff]
    %v898 = vld [vmem:[#allocation2 + $0x20] sm:$0xff]
    %v899 = vld [vmem:[#allocation2 + $0x28] sm:$0xff]
    %v900 = vld [vmem:[#allocation2 + $0x30] sm:$0xff]
    %v901 = vld [vmem:[#allocation2 + $0x38] sm:$0xff]
    %v902 = vld [vmem:[#allocation2 + $0x40] sm:$0xff]
    %v903 = vld [vmem:[#allocation2 + $0x48] sm:$0xff]
    %v904 = vld [vmem:[#allocation2 + $0x50] sm:$0xff]
    %v905 = vld [vmem:[#allocation2 + $0x58] sm:$0xff]
    %v906 = vld [vmem:[#allocation2 + $0x60] sm:$0xff]
    %v907 = vld [vmem:[#allocation2 + $0x68] sm:$0xff]
    %v908 = vld [vmem:[#allocation2 + $0x70] sm:$0xff]
    %v909 = vld [vmem:[#allocation2 + $0x78] sm:$0xff]
    %v910 = vmax.f32 %v894, %v847
    %v911 = vmax.f32 %v895, %v850
    %v912 = vmax.f32 %v896, %v853
    %v913 = vmax.f32 %v897, %v856
    %v914 = vmax.f32 %v898, %v859
    %v915 = vmax.f32 %v899, %v862
    %v916 = vmax.f32 %v900, %v865
    %v917 = vmax.f32 %v901, %v868
    %v918 = vmax.f32 %v902, %v871
    %v919 = vmax.f32 %v903, %v874
    %v920 = vmax.f32 %v904, %v877
    %v921 = vmax.f32 %v905, %v880
    %v922 = vmax.f32 %v906, %v883
    %v923 = vmax.f32 %v907, %v886
    %v924 = vmax.f32 %v908, %v889
    %v925 = vmax.f32 %v909, %v892
    %926 = vst [vmem:[#allocation2] sm:$0xff] %v910
    %927 = vst [vmem:[#allocation2 + $0x8] sm:$0xff] %v911
    %928 = vst [vmem:[#allocation2 + $0x10] sm:$0xff] %v912
    %929 = vst [vmem:[#allocation2 + $0x18] sm:$0xff] %v913
    %930 = vst [vmem:[#allocation2 + $0x20] sm:$0xff] %v914
    %931 = vst [vmem:[#allocation2 + $0x28] sm:$0xff] %v915
    %932 = vst [vmem:[#allocation2 + $0x30] sm:$0xff] %v916
    %933 = vst [vmem:[#allocation2 + $0x38] sm:$0xff] %v917
    %934 = vst [vmem:[#allocation2 + $0x40] sm:$0xff] %v918
    %935 = vst [vmem:[#allocation2 + $0x48] sm:$0xff] %v919
    %936 = vst [vmem:[#allocation2 + $0x50] sm:$0xff] %v920
    %937 = vst [vmem:[#allocation2 + $0x58] sm:$0xff] %v921
    %938 = vst [vmem:[#allocation2 + $0x60] sm:$0xff] %v922
    %939 = vst [vmem:[#allocation2 + $0x68] sm:$0xff] %v923
    %940 = vst [vmem:[#allocation2 + $0x70] sm:$0xff] %v924
    %941 = vst [vmem:[#allocation2 + $0x78] sm:$0xff] %v925
    %942 = vset.pattern.permute.xlu0 4
    %943 = vperm.xlu0 %942, %v83
    %v944 = vpop.permute.xlu0 %943
    %945 = vset.pattern.permute.xlu0 4
    %946 = vperm.xlu0 %945, %v84
    %v947 = vpop.permute.xlu0 %946
    %948 = vset.pattern.permute.xlu0 4
    %949 = vperm.xlu0 %948, %v85
    %v950 = vpop.permute.xlu0 %949
    %951 = vset.pattern.permute.xlu0 4
    %952 = vperm.xlu0 %951, %v86
    %v953 = vpop.permute.xlu0 %952
    %954 = vset.pattern.permute.xlu0 4
    %955 = vperm.xlu0 %954, %v87
    %v956 = vpop.permute.xlu0 %955
    %957 = vset.pattern.permute.xlu0 4
    %958 = vperm.xlu0 %957, %v88
    %v959 = vpop.permute.xlu0 %958
    %960 = vset.pattern.permute.xlu0 4
    %961 = vperm.xlu0 %960, %v89
    %v962 = vpop.permute.xlu0 %961
    %963 = vset.pattern.permute.xlu0 4
    %964 = vperm.xlu0 %963, %v90
    %v965 = vpop.permute.xlu0 %964
    %966 = vset.pattern.permute.xlu0 4
    %967 = vperm.xlu0 %966, %v91
    %v968 = vpop.permute.xlu0 %967
    %969 = vset.pattern.permute.xlu0 4
    %970 = vperm.xlu0 %969, %v92
    %v971 = vpop.permute.xlu0 %970
    %972 = vset.pattern.permute.xlu0 4
    %973 = vperm.xlu0 %972, %v93
    %v974 = vpop.permute.xlu0 %973
    %975 = vset.pattern.permute.xlu0 4
    %976 = vperm.xlu0 %975, %v94
    %v977 = vpop.permute.xlu0 %976
    %978 = vset.pattern.permute.xlu0 4
    %979 = vperm.xlu0 %978, %v95
    %v980 = vpop.permute.xlu0 %979
    %981 = vset.pattern.permute.xlu0 4
    %982 = vperm.xlu0 %981, %v96
    %v983 = vpop.permute.xlu0 %982
    %984 = vset.pattern.permute.xlu0 4
    %985 = vperm.xlu0 %984, %v97
    %v986 = vpop.permute.xlu0 %985
    %987 = vset.pattern.permute.xlu0 4
    %988 = vperm.xlu0 %987, %v98
    %v989 = vpop.permute.xlu0 %988
    %vm990 = vcmp.eq.s32.totalorder %v944, %v105
    %vm991 = vcmp.eq.s32.totalorder %v947, %v105
    %vm992 = vcmp.eq.s32.totalorder %v950, %v105
    %vm993 = vcmp.eq.s32.totalorder %v953, %v105
    %vm994 = vcmp.eq.s32.totalorder %v956, %v105
    %vm995 = vcmp.eq.s32.totalorder %v959, %v105
    %vm996 = vcmp.eq.s32.totalorder %v962, %v105
    %vm997 = vcmp.eq.s32.totalorder %v965, %v105
    %vm998 = vcmp.eq.s32.totalorder %v968, %v105
    %vm999 = vcmp.eq.s32.totalorder %v971, %v105
    %vm1000 = vcmp.eq.s32.totalorder %v974, %v105
    %vm1001 = vcmp.eq.s32.totalorder %v977, %v105
    %vm1002 = vcmp.eq.s32.totalorder %v980, %v105
    %vm1003 = vcmp.eq.s32.totalorder %v983, %v105
    %vm1004 = vcmp.eq.s32.totalorder %v986, %v105
    %vm1005 = vcmp.eq.s32.totalorder %v989, %v105
    %v1006 = vsel %vm990, 1, 0
    %v1007 = vsel %vm991, 1, 0
    %v1008 = vsel %vm992, 1, 0
    %v1009 = vsel %vm993, 1, 0
    %v1010 = vsel %vm994, 1, 0
    %v1011 = vsel %vm995, 1, 0
    %v1012 = vsel %vm996, 1, 0
    %v1013 = vsel %vm997, 1, 0
    %v1014 = vsel %vm998, 1, 0
    %v1015 = vsel %vm999, 1, 0
    %v1016 = vsel %vm1000, 1, 0
    %v1017 = vsel %vm1001, 1, 0
    %v1018 = vsel %vm1002, 1, 0
    %v1019 = vsel %vm1003, 1, 0
    %v1020 = vsel %vm1004, 1, 0
    %v1021 = vsel %vm1005, 1, 0
    %v1022 = vcvt.s32.f32 %v1006
    %v1023 = vcvt.s32.f32 %v1007
    %v1024 = vcvt.s32.f32 %v1008
    %v1025 = vcvt.s32.f32 %v1009
    %v1026 = vcvt.s32.f32 %v1010
    %v1027 = vcvt.s32.f32 %v1011
    %v1028 = vcvt.s32.f32 %v1012
    %v1029 = vcvt.s32.f32 %v1013
    %v1030 = vcvt.s32.f32 %v1014
    %v1031 = vcvt.s32.f32 %v1015
    %v1032 = vcvt.s32.f32 %v1016
    %v1033 = vcvt.s32.f32 %v1017
    %v1034 = vcvt.s32.f32 %v1018
    %v1035 = vcvt.s32.f32 %v1019
    %v1036 = vcvt.s32.f32 %v1020
    %v1037 = vcvt.s32.f32 %v1021
    %1038 = vmatpush.msra.mxu0 %v82
    %1039 = vmatpush.msra.mxu0 %v81
    %1040 = vmatpush.msra.mxu0 %v80
    %1041 = vmatpush.msra.mxu0 %v79
    %1042 = vmatpush.msra.mxu0 %v78
    %1043 = vmatpush.msra.mxu0 %v77
    %1044 = vmatpush.msra.mxu0 %v76
    %1045 = vmatpush.msra.mxu0 %v75
    %1046 = vmatpush.msra.mxu0 %v74
    %1047 = vmatpush.msra.mxu0 %v73
    %1048 = vmatpush.msra.mxu0 %v72
    %1049 = vmatpush.msra.mxu0 %v71
    %1050 = vmatpush.msra.mxu0 %v70
    %1051 = vmatpush.msra.mxu0 %v69
    %1052 = vmatpush.msra.mxu0 %v68
    %1053 = vmatpush.msra.mxu0 %v67
    %1054 = vmatmul.f32.gmra.mxu0 %v1022
    %v1055 = vpop.f32.mrf.mxu0
    %v1056 = vadd.f32 0.0, %v1055
    %1057 = vmatmul.f32.gmra.mxu0 %v1023
    %v1058 = vpop.f32.mrf.mxu0
    %v1059 = vadd.f32 0.0, %v1058
    %1060 = vmatmul.f32.gmra.mxu0 %v1024
    %v1061 = vpop.f32.mrf.mxu0
    %v1062 = vadd.f32 0.0, %v1061
    %1063 = vmatmul.f32.gmra.mxu0 %v1025
    %v1064 = vpop.f32.mrf.mxu0
    %v1065 = vadd.f32 0.0, %v1064
    %1066 = vmatmul.f32.gmra.mxu0 %v1026
    %v1067 = vpop.f32.mrf.mxu0
    %v1068 = vadd.f32 0.0, %v1067
    %1069 = vmatmul.f32.gmra.mxu0 %v1027
    %v1070 = vpop.f32.mrf.mxu0
    %v1071 = vadd.f32 0.0, %v1070
    %1072 = vmatmul.f32.gmra.mxu0 %v1028
    %v1073 = vpop.f32.mrf.mxu0
    %v1074 = vadd.f32 0.0, %v1073
    %1075 = vmatmul.f32.gmra.mxu0 %v1029
    %v1076 = vpop.f32.mrf.mxu0
    %v1077 = vadd.f32 0.0, %v1076
    %1078 = vmatmul.f32.gmra.mxu0 %v1030
    %v1079 = vpop.f32.mrf.mxu0
    %v1080 = vadd.f32 0.0, %v1079
    %1081 = vmatmul.f32.gmra.mxu0 %v1031
    %v1082 = vpop.f32.mrf.mxu0
    %v1083 = vadd.f32 0.0, %v1082
    %1084 = vmatmul.f32.gmra.mxu0 %v1032
    %v1085 = vpop.f32.mrf.mxu0
    %v1086 = vadd.f32 0.0, %v1085
    %1087 = vmatmul.f32.gmra.mxu0 %v1033
    %v1088 = vpop.f32.mrf.mxu0
    %v1089 = vadd.f32 0.0, %v1088
    %1090 = vmatmul.f32.gmra.mxu0 %v1034
    %v1091 = vpop.f32.mrf.mxu0
    %v1092 = vadd.f32 0.0, %v1091
    %1093 = vmatmul.f32.gmra.mxu0 %v1035
    %v1094 = vpop.f32.mrf.mxu0
    %v1095 = vadd.f32 0.0, %v1094
    %1096 = vmatmul.f32.gmra.mxu0 %v1036
    %v1097 = vpop.f32.mrf.mxu0
    %v1098 = vadd.f32 0.0, %v1097
    %1099 = vmatmul.f32.gmra.mxu0 %v1037
    %v1100 = vpop.f32.mrf.mxu0
    %v1101 = vadd.f32 0.0, %v1100
    %1102 = vdwg.mxu0
    %v1103 = vld [vmem:[#allocation2] sm:$0xff]
    %v1104 = vld [vmem:[#allocation2 + $0x8] sm:$0xff]
    %v1105 = vld [vmem:[#allocation2 + $0x10] sm:$0xff]
    %v1106 = vld [vmem:[#allocation2 + $0x18] sm:$0xff]
    %v1107 = vld [vmem:[#allocation2 + $0x20] sm:$0xff]
    %v1108 = vld [vmem:[#allocation2 + $0x28] sm:$0xff]
    %v1109 = vld [vmem:[#allocation2 + $0x30] sm:$0xff]
    %v1110 = vld [vmem:[#allocation2 + $0x38] sm:$0xff]
    %v1111 = vld [vmem:[#allocation2 + $0x40] sm:$0xff]
    %v1112 = vld [vmem:[#allocation2 + $0x48] sm:$0xff]
    %v1113 = vld [vmem:[#allocation2 + $0x50] sm:$0xff]
    %v1114 = vld [vmem:[#allocation2 + $0x58] sm:$0xff]
    %v1115 = vld [vmem:[#allocation2 + $0x60] sm:$0xff]
    %v1116 = vld [vmem:[#allocation2 + $0x68] sm:$0xff]
    %v1117 = vld [vmem:[#allocation2 + $0x70] sm:$0xff]
    %v1118 = vld [vmem:[#allocation2 + $0x78] sm:$0xff]
    %v1119 = vmax.f32 %v1103, %v1056
    %v1120 = vmax.f32 %v1104, %v1059
    %v1121 = vmax.f32 %v1105, %v1062
    %v1122 = vmax.f32 %v1106, %v1065
    %v1123 = vmax.f32 %v1107, %v1068
    %v1124 = vmax.f32 %v1108, %v1071
    %v1125 = vmax.f32 %v1109, %v1074
    %v1126 = vmax.f32 %v1110, %v1077
    %v1127 = vmax.f32 %v1111, %v1080
    %v1128 = vmax.f32 %v1112, %v1083
    %v1129 = vmax.f32 %v1113, %v1086
    %v1130 = vmax.f32 %v1114, %v1089
    %v1131 = vmax.f32 %v1115, %v1092
    %v1132 = vmax.f32 %v1116, %v1095
    %v1133 = vmax.f32 %v1117, %v1098
    %v1134 = vmax.f32 %v1118, %v1101
    %1135 = vst [vmem:[#allocation2] sm:$0xff] %v1119
    %1136 = vst [vmem:[#allocation2 + $0x8] sm:$0xff] %v1120
    %1137 = vst [vmem:[#allocation2 + $0x10] sm:$0xff] %v1121
    %1138 = vst [vmem:[#allocation2 + $0x18] sm:$0xff] %v1122
    %1139 = vst [vmem:[#allocation2 + $0x20] sm:$0xff] %v1123
    %1140 = vst [vmem:[#allocation2 + $0x28] sm:$0xff] %v1124
    %1141 = vst [vmem:[#allocation2 + $0x30] sm:$0xff] %v1125
    %1142 = vst [vmem:[#allocation2 + $0x38] sm:$0xff] %v1126
    %1143 = vst [vmem:[#allocation2 + $0x40] sm:$0xff] %v1127
    %1144 = vst [vmem:[#allocation2 + $0x48] sm:$0xff] %v1128
    %1145 = vst [vmem:[#allocation2 + $0x50] sm:$0xff] %v1129
    %1146 = vst [vmem:[#allocation2 + $0x58] sm:$0xff] %v1130
    %1147 = vst [vmem:[#allocation2 + $0x60] sm:$0xff] %v1131
    %1148 = vst [vmem:[#allocation2 + $0x68] sm:$0xff] %v1132
    %1149 = vst [vmem:[#allocation2 + $0x70] sm:$0xff] %v1133
    %1150 = vst [vmem:[#allocation2 + $0x78] sm:$0xff] %v1134
    %1151 = vset.pattern.permute.xlu0 5
    %1152 = vperm.xlu0 %1151, %v83
    %v1153 = vpop.permute.xlu0 %1152
    %1154 = vset.pattern.permute.xlu0 5
    %1155 = vperm.xlu0 %1154, %v84
    %v1156 = vpop.permute.xlu0 %1155
    %1157 = vset.pattern.permute.xlu0 5
    %1158 = vperm.xlu0 %1157, %v85
    %v1159 = vpop.permute.xlu0 %1158
    %1160 = vset.pattern.permute.xlu0 5
    %1161 = vperm.xlu0 %1160, %v86
    %v1162 = vpop.permute.xlu0 %1161
    %1163 = vset.pattern.permute.xlu0 5
    %1164 = vperm.xlu0 %1163, %v87
    %v1165 = vpop.permute.xlu0 %1164
    %1166 = vset.pattern.permute.xlu0 5
    %1167 = vperm.xlu0 %1166, %v88
    %v1168 = vpop.permute.xlu0 %1167
    %1169 = vset.pattern.permute.xlu0 5
    %1170 = vperm.xlu0 %1169, %v89
    %v1171 = vpop.permute.xlu0 %1170
    %1172 = vset.pattern.permute.xlu0 5
    %1173 = vperm.xlu0 %1172, %v90
    %v1174 = vpop.permute.xlu0 %1173
    %1175 = vset.pattern.permute.xlu0 5
    %1176 = vperm.xlu0 %1175, %v91
    %v1177 = vpop.permute.xlu0 %1176
    %1178 = vset.pattern.permute.xlu0 5
    %1179 = vperm.xlu0 %1178, %v92
    %v1180 = vpop.permute.xlu0 %1179
    %1181 = vset.pattern.permute.xlu0 5
    %1182 = vperm.xlu0 %1181, %v93
    %v1183 = vpop.permute.xlu0 %1182
    %1184 = vset.pattern.permute.xlu0 5
    %1185 = vperm.xlu0 %1184, %v94
    %v1186 = vpop.permute.xlu0 %1185
    %1187 = vset.pattern.permute.xlu0 5
    %1188 = vperm.xlu0 %1187, %v95
    %v1189 = vpop.permute.xlu0 %1188
    %1190 = vset.pattern.permute.xlu0 5
    %1191 = vperm.xlu0 %1190, %v96
    %v1192 = vpop.permute.xlu0 %1191
    %1193 = vset.pattern.permute.xlu0 5
    %1194 = vperm.xlu0 %1193, %v97
    %v1195 = vpop.permute.xlu0 %1194
    %1196 = vset.pattern.permute.xlu0 5
    %1197 = vperm.xlu0 %1196, %v98
    %v1198 = vpop.permute.xlu0 %1197
    %vm1199 = vcmp.eq.s32.totalorder %v1153, %v105
    %vm1200 = vcmp.eq.s32.totalorder %v1156, %v105
    %vm1201 = vcmp.eq.s32.totalorder %v1159, %v105
    %vm1202 = vcmp.eq.s32.totalorder %v1162, %v105
    %vm1203 = vcmp.eq.s32.totalorder %v1165, %v105
    %vm1204 = vcmp.eq.s32.totalorder %v1168, %v105
    %vm1205 = vcmp.eq.s32.totalorder %v1171, %v105
    %vm1206 = vcmp.eq.s32.totalorder %v1174, %v105
    %vm1207 = vcmp.eq.s32.totalorder %v1177, %v105
    %vm1208 = vcmp.eq.s32.totalorder %v1180, %v105
    %vm1209 = vcmp.eq.s32.totalorder %v1183, %v105
    %vm1210 = vcmp.eq.s32.totalorder %v1186, %v105
    %vm1211 = vcmp.eq.s32.totalorder %v1189, %v105
    %vm1212 = vcmp.eq.s32.totalorder %v1192, %v105
    %vm1213 = vcmp.eq.s32.totalorder %v1195, %v105
    %vm1214 = vcmp.eq.s32.totalorder %v1198, %v105
    %v1215 = vsel %vm1199, 1, 0
    %v1216 = vsel %vm1200, 1, 0
    %v1217 = vsel %vm1201, 1, 0
    %v1218 = vsel %vm1202, 1, 0
    %v1219 = vsel %vm1203, 1, 0
    %v1220 = vsel %vm1204, 1, 0
    %v1221 = vsel %vm1205, 1, 0
    %v1222 = vsel %vm1206, 1, 0
    %v1223 = vsel %vm1207, 1, 0
    %v1224 = vsel %vm1208, 1, 0
    %v1225 = vsel %vm1209, 1, 0
    %v1226 = vsel %vm1210, 1, 0
    %v1227 = vsel %vm1211, 1, 0
    %v1228 = vsel %vm1212, 1, 0
    %v1229 = vsel %vm1213, 1, 0
    %v1230 = vsel %vm1214, 1, 0
    %v1231 = vcvt.s32.f32 %v1215
    %v1232 = vcvt.s32.f32 %v1216
    %v1233 = vcvt.s32.f32 %v1217
    %v1234 = vcvt.s32.f32 %v1218
    %v1235 = vcvt.s32.f32 %v1219
    %v1236 = vcvt.s32.f32 %v1220
    %v1237 = vcvt.s32.f32 %v1221
    %v1238 = vcvt.s32.f32 %v1222
    %v1239 = vcvt.s32.f32 %v1223
    %v1240 = vcvt.s32.f32 %v1224
    %v1241 = vcvt.s32.f32 %v1225
    %v1242 = vcvt.s32.f32 %v1226
    %v1243 = vcvt.s32.f32 %v1227
    %v1244 = vcvt.s32.f32 %v1228
    %v1245 = vcvt.s32.f32 %v1229
    %v1246 = vcvt.s32.f32 %v1230
    %1247 = vmatpush.msra.mxu0 %v82
    %1248 = vmatpush.msra.mxu0 %v81
    %1249 = vmatpush.msra.mxu0 %v80
    %1250 = vmatpush.msra.mxu0 %v79
    %1251 = vmatpush.msra.mxu0 %v78
    %1252 = vmatpush.msra.mxu0 %v77
    %1253 = vmatpush.msra.mxu0 %v76
    %1254 = vmatpush.msra.mxu0 %v75
    %1255 = vmatpush.msra.mxu0 %v74
    %1256 = vmatpush.msra.mxu0 %v73
    %1257 = vmatpush.msra.mxu0 %v72
    %1258 = vmatpush.msra.mxu0 %v71
    %1259 = vmatpush.msra.mxu0 %v70
    %1260 = vmatpush.msra.mxu0 %v69
    %1261 = vmatpush.msra.mxu0 %v68
    %1262 = vmatpush.msra.mxu0 %v67
    %1263 = vmatmul.f32.gmra.mxu0 %v1231
    %v1264 = vpop.f32.mrf.mxu0
    %v1265 = vadd.f32 0.0, %v1264
    %1266 = vmatmul.f32.gmra.mxu0 %v1232
    %v1267 = vpop.f32.mrf.mxu0
    %v1268 = vadd.f32 0.0, %v1267
    %1269 = vmatmul.f32.gmra.mxu0 %v1233
    %v1270 = vpop.f32.mrf.mxu0
    %v1271 = vadd.f32 0.0, %v1270
    %1272 = vmatmul.f32.gmra.mxu0 %v1234
    %v1273 = vpop.f32.mrf.mxu0
    %v1274 = vadd.f32 0.0, %v1273
    %1275 = vmatmul.f32.gmra.mxu0 %v1235
    %v1276 = vpop.f32.mrf.mxu0
    %v1277 = vadd.f32 0.0, %v1276
    %1278 = vmatmul.f32.gmra.mxu0 %v1236
    %v1279 = vpop.f32.mrf.mxu0
    %v1280 = vadd.f32 0.0, %v1279
    %1281 = vmatmul.f32.gmra.mxu0 %v1237
    %v1282 = vpop.f32.mrf.mxu0
    %v1283 = vadd.f32 0.0, %v1282
    %1284 = vmatmul.f32.gmra.mxu0 %v1238
    %v1285 = vpop.f32.mrf.mxu0
    %v1286 = vadd.f32 0.0, %v1285
    %1287 = vmatmul.f32.gmra.mxu0 %v1239
    %v1288 = vpop.f32.mrf.mxu0
    %v1289 = vadd.f32 0.0, %v1288
    %1290 = vmatmul.f32.gmra.mxu0 %v1240
    %v1291 = vpop.f32.mrf.mxu0
    %v1292 = vadd.f32 0.0, %v1291
    %1293 = vmatmul.f32.gmra.mxu0 %v1241
    %v1294 = vpop.f32.mrf.mxu0
    %v1295 = vadd.f32 0.0, %v1294
    %1296 = vmatmul.f32.gmra.mxu0 %v1242
    %v1297 = vpop.f32.mrf.mxu0
    %v1298 = vadd.f32 0.0, %v1297
    %1299 = vmatmul.f32.gmra.mxu0 %v1243
    %v1300 = vpop.f32.mrf.mxu0
    %v1301 = vadd.f32 0.0, %v1300
    %1302 = vmatmul.f32.gmra.mxu0 %v1244
    %v1303 = vpop.f32.mrf.mxu0
    %v1304 = vadd.f32 0.0, %v1303
    %1305 = vmatmul.f32.gmra.mxu0 %v1245
    %v1306 = vpop.f32.mrf.mxu0
    %v1307 = vadd.f32 0.0, %v1306
    %1308 = vmatmul.f32.gmra.mxu0 %v1246
    %v1309 = vpop.f32.mrf.mxu0
    %v1310 = vadd.f32 0.0, %v1309
    %1311 = vdwg.mxu0
    %v1312 = vld [vmem:[#allocation2] sm:$0xff]
    %v1313 = vld [vmem:[#allocation2 + $0x8] sm:$0xff]
    %v1314 = vld [vmem:[#allocation2 + $0x10] sm:$0xff]
    %v1315 = vld [vmem:[#allocation2 + $0x18] sm:$0xff]
    %v1316 = vld [vmem:[#allocation2 + $0x20] sm:$0xff]
    %v1317 = vld [vmem:[#allocation2 + $0x28] sm:$0xff]
    %v1318 = vld [vmem:[#allocation2 + $0x30] sm:$0xff]
    %v1319 = vld [vmem:[#allocation2 + $0x38] sm:$0xff]
    %v1320 = vld [vmem:[#allocation2 + $0x40] sm:$0xff]
    %v1321 = vld [vmem:[#allocation2 + $0x48] sm:$0xff]
    %v1322 = vld [vmem:[#allocation2 + $0x50] sm:$0xff]
    %v1323 = vld [vmem:[#allocation2 + $0x58] sm:$0xff]
    %v1324 = vld [vmem:[#allocation2 + $0x60] sm:$0xff]
    %v1325 = vld [vmem:[#allocation2 + $0x68] sm:$0xff]
    %v1326 = vld [vmem:[#allocation2 + $0x70] sm:$0xff]
    %v1327 = vld [vmem:[#allocation2 + $0x78] sm:$0xff]
    %v1328 = vmax.f32 %v1312, %v1265
    %v1329 = vmax.f32 %v1313, %v1268
    %v1330 = vmax.f32 %v1314, %v1271
    %v1331 = vmax.f32 %v1315, %v1274
    %v1332 = vmax.f32 %v1316, %v1277
    %v1333 = vmax.f32 %v1317, %v1280
    %v1334 = vmax.f32 %v1318, %v1283
    %v1335 = vmax.f32 %v1319, %v1286
    %v1336 = vmax.f32 %v1320, %v1289
    %v1337 = vmax.f32 %v1321, %v1292
    %v1338 = vmax.f32 %v1322, %v1295
    %v1339 = vmax.f32 %v1323, %v1298
    %v1340 = vmax.f32 %v1324, %v1301
    %v1341 = vmax.f32 %v1325, %v1304
    %v1342 = vmax.f32 %v1326, %v1307
    %v1343 = vmax.f32 %v1327, %v1310
    %1344 = vst [vmem:[#allocation2] sm:$0xff] %v1328
    %1345 = vst [vmem:[#allocation2 + $0x8] sm:$0xff] %v1329
    %1346 = vst [vmem:[#allocation2 + $0x10] sm:$0xff] %v1330
    %1347 = vst [vmem:[#allocation2 + $0x18] sm:$0xff] %v1331
    %1348 = vst [vmem:[#allocation2 + $0x20] sm:$0xff] %v1332
    %1349 = vst [vmem:[#allocation2 + $0x28] sm:$0xff] %v1333
    %1350 = vst [vmem:[#allocation2 + $0x30] sm:$0xff] %v1334
    %1351 = vst [vmem:[#allocation2 + $0x38] sm:$0xff] %v1335
    %1352 = vst [vmem:[#allocation2 + $0x40] sm:$0xff] %v1336
    %1353 = vst [vmem:[#allocation2 + $0x48] sm:$0xff] %v1337
    %1354 = vst [vmem:[#allocation2 + $0x50] sm:$0xff] %v1338
    %1355 = vst [vmem:[#allocation2 + $0x58] sm:$0xff] %v1339
    %1356 = vst [vmem:[#allocation2 + $0x60] sm:$0xff] %v1340
    %1357 = vst [vmem:[#allocation2 + $0x68] sm:$0xff] %v1341
    %1358 = vst [vmem:[#allocation2 + $0x70] sm:$0xff] %v1342
    %1359 = vst [vmem:[#allocation2 + $0x78] sm:$0xff] %v1343
    %1360 = vset.pattern.permute.xlu0 6
    %1361 = vperm.xlu0 %1360, %v83
    %v1362 = vpop.permute.xlu0 %1361
    %1363 = vset.pattern.permute.xlu0 6
    %1364 = vperm.xlu0 %1363, %v84
    %v1365 = vpop.permute.xlu0 %1364
    %1366 = vset.pattern.permute.xlu0 6
    %1367 = vperm.xlu0 %1366, %v85
    %v1368 = vpop.permute.xlu0 %1367
    %1369 = vset.pattern.permute.xlu0 6
    %1370 = vperm.xlu0 %1369, %v86
    %v1371 = vpop.permute.xlu0 %1370
    %1372 = vset.pattern.permute.xlu0 6
    %1373 = vperm.xlu0 %1372, %v87
    %v1374 = vpop.permute.xlu0 %1373
    %1375 = vset.pattern.permute.xlu0 6
    %1376 = vperm.xlu0 %1375, %v88
    %v1377 = vpop.permute.xlu0 %1376
    %1378 = vset.pattern.permute.xlu0 6
    %1379 = vperm.xlu0 %1378, %v89
    %v1380 = vpop.permute.xlu0 %1379
    %1381 = vset.pattern.permute.xlu0 6
    %1382 = vperm.xlu0 %1381, %v90
    %v1383 = vpop.permute.xlu0 %1382
    %1384 = vset.pattern.permute.xlu0 6
    %1385 = vperm.xlu0 %1384, %v91
    %v1386 = vpop.permute.xlu0 %1385
    %1387 = vset.pattern.permute.xlu0 6
    %1388 = vperm.xlu0 %1387, %v92
    %v1389 = vpop.permute.xlu0 %1388
    %1390 = vset.pattern.permute.xlu0 6
    %1391 = vperm.xlu0 %1390, %v93
    %v1392 = vpop.permute.xlu0 %1391
    %1393 = vset.pattern.permute.xlu0 6
    %1394 = vperm.xlu0 %1393, %v94
    %v1395 = vpop.permute.xlu0 %1394
    %1396 = vset.pattern.permute.xlu0 6
    %1397 = vperm.xlu0 %1396, %v95
    %v1398 = vpop.permute.xlu0 %1397
    %1399 = vset.pattern.permute.xlu0 6
    %1400 = vperm.xlu0 %1399, %v96
    %v1401 = vpop.permute.xlu0 %1400
    %1402 = vset.pattern.permute.xlu0 6
    %1403 = vperm.xlu0 %1402, %v97
    %v1404 = vpop.permute.xlu0 %1403
    %1405 = vset.pattern.permute.xlu0 6
    %1406 = vperm.xlu0 %1405, %v98
    %v1407 = vpop.permute.xlu0 %1406
    %vm1408 = vcmp.eq.s32.totalorder %v1362, %v105
    %vm1409 = vcmp.eq.s32.totalorder %v1365, %v105
    %vm1410 = vcmp.eq.s32.totalorder %v1368, %v105
    %vm1411 = vcmp.eq.s32.totalorder %v1371, %v105
    %vm1412 = vcmp.eq.s32.totalorder %v1374, %v105
    %vm1413 = vcmp.eq.s32.totalorder %v1377, %v105
    %vm1414 = vcmp.eq.s32.totalorder %v1380, %v105
    %vm1415 = vcmp.eq.s32.totalorder %v1383, %v105
    %vm1416 = vcmp.eq.s32.totalorder %v1386, %v105
    %vm1417 = vcmp.eq.s32.totalorder %v1389, %v105
    %vm1418 = vcmp.eq.s32.totalorder %v1392, %v105
    %vm1419 = vcmp.eq.s32.totalorder %v1395, %v105
    %vm1420 = vcmp.eq.s32.totalorder %v1398, %v105
    %vm1421 = vcmp.eq.s32.totalorder %v1401, %v105
    %vm1422 = vcmp.eq.s32.totalorder %v1404, %v105
    %vm1423 = vcmp.eq.s32.totalorder %v1407, %v105
    %v1424 = vsel %vm1408, 1, 0
    %v1425 = vsel %vm1409, 1, 0
    %v1426 = vsel %vm1410, 1, 0
    %v1427 = vsel %vm1411, 1, 0
    %v1428 = vsel %vm1412, 1, 0
    %v1429 = vsel %vm1413, 1, 0
    %v1430 = vsel %vm1414, 1, 0
    %v1431 = vsel %vm1415, 1, 0
    %v1432 = vsel %vm1416, 1, 0
    %v1433 = vsel %vm1417, 1, 0
    %v1434 = vsel %vm1418, 1, 0
    %v1435 = vsel %vm1419, 1, 0
    %v1436 = vsel %vm1420, 1, 0
    %v1437 = vsel %vm1421, 1, 0
    %v1438 = vsel %vm1422, 1, 0
    %v1439 = vsel %vm1423, 1, 0
    %v1440 = vcvt.s32.f32 %v1424
    %v1441 = vcvt.s32.f32 %v1425
    %v1442 = vcvt.s32.f32 %v1426
    %v1443 = vcvt.s32.f32 %v1427
    %v1444 = vcvt.s32.f32 %v1428
    %v1445 = vcvt.s32.f32 %v1429
    %v1446 = vcvt.s32.f32 %v1430
    %v1447 = vcvt.s32.f32 %v1431
    %v1448 = vcvt.s32.f32 %v1432
    %v1449 = vcvt.s32.f32 %v1433
    %v1450 = vcvt.s32.f32 %v1434
    %v1451 = vcvt.s32.f32 %v1435
    %v1452 = vcvt.s32.f32 %v1436
    %v1453 = vcvt.s32.f32 %v1437
    %v1454 = vcvt.s32.f32 %v1438
    %v1455 = vcvt.s32.f32 %v1439
    %1456 = vmatpush.msra.mxu0 %v82
    %1457 = vmatpush.msra.mxu0 %v81
    %1458 = vmatpush.msra.mxu0 %v80
    %1459 = vmatpush.msra.mxu0 %v79
    %1460 = vmatpush.msra.mxu0 %v78
    %1461 = vmatpush.msra.mxu0 %v77
    %1462 = vmatpush.msra.mxu0 %v76
    %1463 = vmatpush.msra.mxu0 %v75
    %1464 = vmatpush.msra.mxu0 %v74
    %1465 = vmatpush.msra.mxu0 %v73
    %1466 = vmatpush.msra.mxu0 %v72
    %1467 = vmatpush.msra.mxu0 %v71
    %1468 = vmatpush.msra.mxu0 %v70
    %1469 = vmatpush.msra.mxu0 %v69
    %1470 = vmatpush.msra.mxu0 %v68
    %1471 = vmatpush.msra.mxu0 %v67
    %1472 = vmatmul.f32.gmra.mxu0 %v1440
    %v1473 = vpop.f32.mrf.mxu0
    %v1474 = vadd.f32 0.0, %v1473
    %1475 = vmatmul.f32.gmra.mxu0 %v1441
    %v1476 = vpop.f32.mrf.mxu0
    %v1477 = vadd.f32 0.0, %v1476
    %1478 = vmatmul.f32.gmra.mxu0 %v1442
    %v1479 = vpop.f32.mrf.mxu0
    %v1480 = vadd.f32 0.0, %v1479
    %1481 = vmatmul.f32.gmra.mxu0 %v1443
    %v1482 = vpop.f32.mrf.mxu0
    %v1483 = vadd.f32 0.0, %v1482
    %1484 = vmatmul.f32.gmra.mxu0 %v1444
    %v1485 = vpop.f32.mrf.mxu0
    %v1486 = vadd.f32 0.0, %v1485
    %1487 = vmatmul.f32.gmra.mxu0 %v1445
    %v1488 = vpop.f32.mrf.mxu0
    %v1489 = vadd.f32 0.0, %v1488
    %1490 = vmatmul.f32.gmra.mxu0 %v1446
    %v1491 = vpop.f32.mrf.mxu0
    %v1492 = vadd.f32 0.0, %v1491
    %1493 = vmatmul.f32.gmra.mxu0 %v1447
    %v1494 = vpop.f32.mrf.mxu0
    %v1495 = vadd.f32 0.0, %v1494
    %1496 = vmatmul.f32.gmra.mxu0 %v1448
    %v1497 = vpop.f32.mrf.mxu0
    %v1498 = vadd.f32 0.0, %v1497
    %1499 = vmatmul.f32.gmra.mxu0 %v1449
    %v1500 = vpop.f32.mrf.mxu0
    %v1501 = vadd.f32 0.0, %v1500
    %1502 = vmatmul.f32.gmra.mxu0 %v1450
    %v1503 = vpop.f32.mrf.mxu0
    %v1504 = vadd.f32 0.0, %v1503
    %1505 = vmatmul.f32.gmra.mxu0 %v1451
    %v1506 = vpop.f32.mrf.mxu0
    %v1507 = vadd.f32 0.0, %v1506
    %1508 = vmatmul.f32.gmra.mxu0 %v1452
    %v1509 = vpop.f32.mrf.mxu0
    %v1510 = vadd.f32 0.0, %v1509
    %1511 = vmatmul.f32.gmra.mxu0 %v1453
    %v1512 = vpop.f32.mrf.mxu0
    %v1513 = vadd.f32 0.0, %v1512
    %1514 = vmatmul.f32.gmra.mxu0 %v1454
    %v1515 = vpop.f32.mrf.mxu0
    %v1516 = vadd.f32 0.0, %v1515
    %1517 = vmatmul.f32.gmra.mxu0 %v1455
    %v1518 = vpop.f32.mrf.mxu0
    %v1519 = vadd.f32 0.0, %v1518
    %1520 = vdwg.mxu0
    %v1521 = vld [vmem:[#allocation2] sm:$0xff]
    %v1522 = vld [vmem:[#allocation2 + $0x8] sm:$0xff]
    %v1523 = vld [vmem:[#allocation2 + $0x10] sm:$0xff]
    %v1524 = vld [vmem:[#allocation2 + $0x18] sm:$0xff]
    %v1525 = vld [vmem:[#allocation2 + $0x20] sm:$0xff]
    %v1526 = vld [vmem:[#allocation2 + $0x28] sm:$0xff]
    %v1527 = vld [vmem:[#allocation2 + $0x30] sm:$0xff]
    %v1528 = vld [vmem:[#allocation2 + $0x38] sm:$0xff]
    %v1529 = vld [vmem:[#allocation2 + $0x40] sm:$0xff]
    %v1530 = vld [vmem:[#allocation2 + $0x48] sm:$0xff]
    %v1531 = vld [vmem:[#allocation2 + $0x50] sm:$0xff]
    %v1532 = vld [vmem:[#allocation2 + $0x58] sm:$0xff]
    %v1533 = vld [vmem:[#allocation2 + $0x60] sm:$0xff]
    %v1534 = vld [vmem:[#allocation2 + $0x68] sm:$0xff]
    %v1535 = vld [vmem:[#allocation2 + $0x70] sm:$0xff]
    %v1536 = vld [vmem:[#allocation2 + $0x78] sm:$0xff]
    %v1537 = vmax.f32 %v1521, %v1474
    %v1538 = vmax.f32 %v1522, %v1477
    %v1539 = vmax.f32 %v1523, %v1480
    %v1540 = vmax.f32 %v1524, %v1483
    %v1541 = vmax.f32 %v1525, %v1486
    %v1542 = vmax.f32 %v1526, %v1489
    %v1543 = vmax.f32 %v1527, %v1492
    %v1544 = vmax.f32 %v1528, %v1495
    %v1545 = vmax.f32 %v1529, %v1498
    %v1546 = vmax.f32 %v1530, %v1501
    %v1547 = vmax.f32 %v1531, %v1504
    %v1548 = vmax.f32 %v1532, %v1507
    %v1549 = vmax.f32 %v1533, %v1510
    %v1550 = vmax.f32 %v1534, %v1513
    %v1551 = vmax.f32 %v1535, %v1516
    %v1552 = vmax.f32 %v1536, %v1519
    %1553 = vst [vmem:[#allocation2] sm:$0xff] %v1537
    %1554 = vst [vmem:[#allocation2 + $0x8] sm:$0xff] %v1538
    %1555 = vst [vmem:[#allocation2 + $0x10] sm:$0xff] %v1539
    %1556 = vst [vmem:[#allocation2 + $0x18] sm:$0xff] %v1540
    %1557 = vst [vmem:[#allocation2 + $0x20] sm:$0xff] %v1541
    %1558 = vst [vmem:[#allocation2 + $0x28] sm:$0xff] %v1542
    %1559 = vst [vmem:[#allocation2 + $0x30] sm:$0xff] %v1543
    %1560 = vst [vmem:[#allocation2 + $0x38] sm:$0xff] %v1544
    %1561 = vst [vmem:[#allocation2 + $0x40] sm:$0xff] %v1545
    %1562 = vst [vmem:[#allocation2 + $0x48] sm:$0xff] %v1546
    %1563 = vst [vmem:[#allocation2 + $0x50] sm:$0xff] %v1547
    %1564 = vst [vmem:[#allocation2 + $0x58] sm:$0xff] %v1548
    %1565 = vst [vmem:[#allocation2 + $0x60] sm:$0xff] %v1549
    %1566 = vst [vmem:[#allocation2 + $0x68] sm:$0xff] %v1550
    %1567 = vst [vmem:[#allocation2 + $0x70] sm:$0xff] %v1551
    %1568 = vst [vmem:[#allocation2 + $0x78] sm:$0xff] %v1552
    %1569 = vset.pattern.permute.xlu0 7
    %1570 = vperm.xlu0 %1569, %v83
    %v1571 = vpop.permute.xlu0 %1570
    %1572 = vset.pattern.permute.xlu0 7
    %1573 = vperm.xlu0 %1572, %v84
    %v1574 = vpop.permute.xlu0 %1573
    %1575 = vset.pattern.permute.xlu0 7
    %1576 = vperm.xlu0 %1575, %v85
    %v1577 = vpop.permute.xlu0 %1576
    %1578 = vset.pattern.permute.xlu0 7
    %1579 = vperm.xlu0 %1578, %v86
    %v1580 = vpop.permute.xlu0 %1579
    %1581 = vset.pattern.permute.xlu0 7
    %1582 = vperm.xlu0 %1581, %v87
    %v1583 = vpop.permute.xlu0 %1582
    %1584 = vset.pattern.permute.xlu0 7
    %1585 = vperm.xlu0 %1584, %v88
    %v1586 = vpop.permute.xlu0 %1585
    %1587 = vset.pattern.permute.xlu0 7
    %1588 = vperm.xlu0 %1587, %v89
    %v1589 = vpop.permute.xlu0 %1588
    %1590 = vset.pattern.permute.xlu0 7
    %1591 = vperm.xlu0 %1590, %v90
    %v1592 = vpop.permute.xlu0 %1591
    %1593 = vset.pattern.permute.xlu0 7
    %1594 = vperm.xlu0 %1593, %v91
    %v1595 = vpop.permute.xlu0 %1594
    %1596 = vset.pattern.permute.xlu0 7
    %1597 = vperm.xlu0 %1596, %v92
    %v1598 = vpop.permute.xlu0 %1597
    %1599 = vset.pattern.permute.xlu0 7
    %1600 = vperm.xlu0 %1599, %v93
    %v1601 = vpop.permute.xlu0 %1600
    %1602 = vset.pattern.permute.xlu0 7
    %1603 = vperm.xlu0 %1602, %v94
    %v1604 = vpop.permute.xlu0 %1603
    %1605 = vset.pattern.permute.xlu0 7
    %1606 = vperm.xlu0 %1605, %v95
    %v1607 = vpop.permute.xlu0 %1606
    %1608 = vset.pattern.permute.xlu0 7
    %1609 = vperm.xlu0 %1608, %v96
    %v1610 = vpop.permute.xlu0 %1609
    %1611 = vset.pattern.permute.xlu0 7
    %1612 = vperm.xlu0 %1611, %v97
    %v1613 = vpop.permute.xlu0 %1612
    %1614 = vset.pattern.permute.xlu0 7
    %1615 = vperm.xlu0 %1614, %v98
    %v1616 = vpop.permute.xlu0 %1615
    %vm1617 = vcmp.eq.s32.totalorder %v1571, %v105
    %vm1618 = vcmp.eq.s32.totalorder %v1574, %v105
    %vm1619 = vcmp.eq.s32.totalorder %v1577, %v105
    %vm1620 = vcmp.eq.s32.totalorder %v1580, %v105
    %vm1621 = vcmp.eq.s32.totalorder %v1583, %v105
    %vm1622 = vcmp.eq.s32.totalorder %v1586, %v105
    %vm1623 = vcmp.eq.s32.totalorder %v1589, %v105
    %vm1624 = vcmp.eq.s32.totalorder %v1592, %v105
    %vm1625 = vcmp.eq.s32.totalorder %v1595, %v105
    %vm1626 = vcmp.eq.s32.totalorder %v1598, %v105
    %vm1627 = vcmp.eq.s32.totalorder %v1601, %v105
    %vm1628 = vcmp.eq.s32.totalorder %v1604, %v105
    %vm1629 = vcmp.eq.s32.totalorder %v1607, %v105
    %vm1630 = vcmp.eq.s32.totalorder %v1610, %v105
    %vm1631 = vcmp.eq.s32.totalorder %v1613, %v105
    %vm1632 = vcmp.eq.s32.totalorder %v1616, %v105
    %v1633 = vsel %vm1617, 1, 0
    %v1634 = vsel %vm1618, 1, 0
    %v1635 = vsel %vm1619, 1, 0
    %v1636 = vsel %vm1620, 1, 0
    %v1637 = vsel %vm1621, 1, 0
    %v1638 = vsel %vm1622, 1, 0
    %v1639 = vsel %vm1623, 1, 0
    %v1640 = vsel %vm1624, 1, 0
    %v1641 = vsel %vm1625, 1, 0
    %v1642 = vsel %vm1626, 1, 0
    %v1643 = vsel %vm1627, 1, 0
    %v1644 = vsel %vm1628, 1, 0
    %v1645 = vsel %vm1629, 1, 0
    %v1646 = vsel %vm1630, 1, 0
    %v1647 = vsel %vm1631, 1, 0
    %v1648 = vsel %vm1632, 1, 0
    %v1649 = vcvt.s32.f32 %v1633
    %v1650 = vcvt.s32.f32 %v1634
    %v1651 = vcvt.s32.f32 %v1635
    %v1652 = vcvt.s32.f32 %v1636
    %v1653 = vcvt.s32.f32 %v1637
    %v1654 = vcvt.s32.f32 %v1638
    %v1655 = vcvt.s32.f32 %v1639
    %v1656 = vcvt.s32.f32 %v1640
    %v1657 = vcvt.s32.f32 %v1641
    %v1658 = vcvt.s32.f32 %v1642
    %v1659 = vcvt.s32.f32 %v1643
    %v1660 = vcvt.s32.f32 %v1644
    %v1661 = vcvt.s32.f32 %v1645
    %v1662 = vcvt.s32.f32 %v1646
    %v1663 = vcvt.s32.f32 %v1647
    %v1664 = vcvt.s32.f32 %v1648
    %1665 = vmatpush.msra.mxu0 %v82
    %1666 = vmatpush.msra.mxu0 %v81
    %1667 = vmatpush.msra.mxu0 %v80
    %1668 = vmatpush.msra.mxu0 %v79
    %1669 = vmatpush.msra.mxu0 %v78
    %1670 = vmatpush.msra.mxu0 %v77
    %1671 = vmatpush.msra.mxu0 %v76
    %1672 = vmatpush.msra.mxu0 %v75
    %1673 = vmatpush.msra.mxu0 %v74
    %1674 = vmatpush.msra.mxu0 %v73
    %1675 = vmatpush.msra.mxu0 %v72
    %1676 = vmatpush.msra.mxu0 %v71
    %1677 = vmatpush.msra.mxu0 %v70
    %1678 = vmatpush.msra.mxu0 %v69
    %1679 = vmatpush.msra.mxu0 %v68
    %1680 = vmatpush.msra.mxu0 %v67
    %1681 = vmatmul.f32.gmra.mxu0 %v1649
    %v1682 = vpop.f32.mrf.mxu0
    %v1683 = vadd.f32 0.0, %v1682
    %1684 = vmatmul.f32.gmra.mxu0 %v1650
    %v1685 = vpop.f32.mrf.mxu0
    %v1686 = vadd.f32 0.0, %v1685
    %1687 = vmatmul.f32.gmra.mxu0 %v1651
    %v1688 = vpop.f32.mrf.mxu0
    %v1689 = vadd.f32 0.0, %v1688
    %1690 = vmatmul.f32.gmra.mxu0 %v1652
    %v1691 = vpop.f32.mrf.mxu0
    %v1692 = vadd.f32 0.0, %v1691
    %1693 = vmatmul.f32.gmra.mxu0 %v1653
    %v1694 = vpop.f32.mrf.mxu0
    %v1695 = vadd.f32 0.0, %v1694
    %1696 = vmatmul.f32.gmra.mxu0 %v1654
    %v1697 = vpop.f32.mrf.mxu0
    %v1698 = vadd.f32 0.0, %v1697
    %1699 = vmatmul.f32.gmra.mxu0 %v1655
    %v1700 = vpop.f32.mrf.mxu0
    %v1701 = vadd.f32 0.0, %v1700
    %1702 = vmatmul.f32.gmra.mxu0 %v1656
    %v1703 = vpop.f32.mrf.mxu0
    %v1704 = vadd.f32 0.0, %v1703
    %1705 = vmatmul.f32.gmra.mxu0 %v1657
    %v1706 = vpop.f32.mrf.mxu0
    %v1707 = vadd.f32 0.0, %v1706
    %1708 = vmatmul.f32.gmra.mxu0 %v1658
    %v1709 = vpop.f32.mrf.mxu0
    %v1710 = vadd.f32 0.0, %v1709
    %1711 = vmatmul.f32.gmra.mxu0 %v1659
    %v1712 = vpop.f32.mrf.mxu0
    %v1713 = vadd.f32 0.0, %v1712
    %1714 = vmatmul.f32.gmra.mxu0 %v1660
    %v1715 = vpop.f32.mrf.mxu0
    %v1716 = vadd.f32 0.0, %v1715
    %1717 = vmatmul.f32.gmra.mxu0 %v1661
    %v1718 = vpop.f32.mrf.mxu0
    %v1719 = vadd.f32 0.0, %v1718
    %1720 = vmatmul.f32.gmra.mxu0 %v1662
    %v1721 = vpop.f32.mrf.mxu0
    %v1722 = vadd.f32 0.0, %v1721
    %1723 = vmatmul.f32.gmra.mxu0 %v1663
    %v1724 = vpop.f32.mrf.mxu0
    %v1725 = vadd.f32 0.0, %v1724
    %1726 = vmatmul.f32.gmra.mxu0 %v1664
    %v1727 = vpop.f32.mrf.mxu0
    %v1728 = vadd.f32 0.0, %v1727
    %1729 = vdwg.mxu0
    %v1730 = vld [vmem:[#allocation2] sm:$0xff]
    %v1731 = vld [vmem:[#allocation2 + $0x8] sm:$0xff]
    %v1732 = vld [vmem:[#allocation2 + $0x10] sm:$0xff]
    %v1733 = vld [vmem:[#allocation2 + $0x18] sm:$0xff]
    %v1734 = vld [vmem:[#allocation2 + $0x20] sm:$0xff]
    %v1735 = vld [vmem:[#allocation2 + $0x28] sm:$0xff]
    %v1736 = vld [vmem:[#allocation2 + $0x30] sm:$0xff]
    %v1737 = vld [vmem:[#allocation2 + $0x38] sm:$0xff]
    %v1738 = vld [vmem:[#allocation2 + $0x40] sm:$0xff]
    %v1739 = vld [vmem:[#allocation2 + $0x48] sm:$0xff]
    %v1740 = vld [vmem:[#allocation2 + $0x50] sm:$0xff]
    %v1741 = vld [vmem:[#allocation2 + $0x58] sm:$0xff]
    %v1742 = vld [vmem:[#allocation2 + $0x60] sm:$0xff]
    %v1743 = vld [vmem:[#allocation2 + $0x68] sm:$0xff]
    %v1744 = vld [vmem:[#allocation2 + $0x70] sm:$0xff]
    %v1745 = vld [vmem:[#allocation2 + $0x78] sm:$0xff]
    %v1746 = vmax.f32 %v1730, %v1683
    %v1747 = vmax.f32 %v1731, %v1686
    %v1748 = vmax.f32 %v1732, %v1689
    %v1749 = vmax.f32 %v1733, %v1692
    %v1750 = vmax.f32 %v1734, %v1695
    %v1751 = vmax.f32 %v1735, %v1698
    %v1752 = vmax.f32 %v1736, %v1701
    %v1753 = vmax.f32 %v1737, %v1704
    %v1754 = vmax.f32 %v1738, %v1707
    %v1755 = vmax.f32 %v1739, %v1710
    %v1756 = vmax.f32 %v1740, %v1713
    %v1757 = vmax.f32 %v1741, %v1716
    %v1758 = vmax.f32 %v1742, %v1719
    %v1759 = vmax.f32 %v1743, %v1722
    %v1760 = vmax.f32 %v1744, %v1725
    %v1761 = vmax.f32 %v1745, %v1728
    %1762 = vst [vmem:[#allocation2] sm:$0xff] %v1746
    %1763 = vst [vmem:[#allocation2 + $0x8] sm:$0xff] %v1747
    %1764 = vst [vmem:[#allocation2 + $0x10] sm:$0xff] %v1748
    %1765 = vst [vmem:[#allocation2 + $0x18] sm:$0xff] %v1749
    %1766 = vst [vmem:[#allocation2 + $0x20] sm:$0xff] %v1750
    %1767 = vst [vmem:[#allocation2 + $0x28] sm:$0xff] %v1751
    %1768 = vst [vmem:[#allocation2 + $0x30] sm:$0xff] %v1752
    %1769 = vst [vmem:[#allocation2 + $0x38] sm:$0xff] %v1753
    %1770 = vst [vmem:[#allocation2 + $0x40] sm:$0xff] %v1754
    %1771 = vst [vmem:[#allocation2 + $0x48] sm:$0xff] %v1755
    %1772 = vst [vmem:[#allocation2 + $0x50] sm:$0xff] %v1756
    %1773 = vst [vmem:[#allocation2 + $0x58] sm:$0xff] %v1757
    %1774 = vst [vmem:[#allocation2 + $0x60] sm:$0xff] %v1758
    %1775 = vst [vmem:[#allocation2 + $0x68] sm:$0xff] %v1759
    %1776 = vst [vmem:[#allocation2 + $0x70] sm:$0xff] %v1760
    %1777 = vst [vmem:[#allocation2 + $0x78] sm:$0xff] %v1761
    %1778 = vset.pattern.permute.xlu0 8
    %1779 = vperm.xlu0 %1778, %v83
    %v1780 = vpop.permute.xlu0 %1779
    %1781 = vset.pattern.permute.xlu0 8
    %1782 = vperm.xlu0 %1781, %v84
    %v1783 = vpop.permute.xlu0 %1782
    %1784 = vset.pattern.permute.xlu0 8
    %1785 = vperm.xlu0 %1784, %v85
    %v1786 = vpop.permute.xlu0 %1785
    %1787 = vset.pattern.permute.xlu0 8
    %1788 = vperm.xlu0 %1787, %v86
    %v1789 = vpop.permute.xlu0 %1788
    %1790 = vset.pattern.permute.xlu0 8
    %1791 = vperm.xlu0 %1790, %v87
    %v1792 = vpop.permute.xlu0 %1791
    %1793 = vset.pattern.permute.xlu0 8
    %1794 = vperm.xlu0 %1793, %v88
    %v1795 = vpop.permute.xlu0 %1794
    %1796 = vset.pattern.permute.xlu0 8
    %1797 = vperm.xlu0 %1796, %v89
    %v1798 = vpop.permute.xlu0 %1797
    %1799 = vset.pattern.permute.xlu0 8
    %1800 = vperm.xlu0 %1799, %v90
    %v1801 = vpop.permute.xlu0 %1800
    %1802 = vset.pattern.permute.xlu0 8
    %1803 = vperm.xlu0 %1802, %v91
    %v1804 = vpop.permute.xlu0 %1803
    %1805 = vset.pattern.permute.xlu0 8
    %1806 = vperm.xlu0 %1805, %v92
    %v1807 = vpop.permute.xlu0 %1806
    %1808 = vset.pattern.permute.xlu0 8
    %1809 = vperm.xlu0 %1808, %v93
    %v1810 = vpop.permute.xlu0 %1809
    %1811 = vset.pattern.permute.xlu0 8
    %1812 = vperm.xlu0 %1811, %v94
    %v1813 = vpop.permute.xlu0 %1812
    %1814 = vset.pattern.permute.xlu0 8
    %1815 = vperm.xlu0 %1814, %v95
    %v1816 = vpop.permute.xlu0 %1815
    %1817 = vset.pattern.permute.xlu0 8
    %1818 = vperm.xlu0 %1817, %v96
    %v1819 = vpop.permute.xlu0 %1818
    %1820 = vset.pattern.permute.xlu0 8
    %1821 = vperm.xlu0 %1820, %v97
    %v1822 = vpop.permute.xlu0 %1821
    %1823 = vset.pattern.permute.xlu0 8
    %1824 = vperm.xlu0 %1823, %v98
    %v1825 = vpop.permute.xlu0 %1824
    %vm1826 = vcmp.eq.s32.totalorder %v1780, %v105
    %vm1827 = vcmp.eq.s32.totalorder %v1783, %v105
    %vm1828 = vcmp.eq.s32.totalorder %v1786, %v105
    %vm1829 = vcmp.eq.s32.totalorder %v1789, %v105
    %vm1830 = vcmp.eq.s32.totalorder %v1792, %v105
    %vm1831 = vcmp.eq.s32.totalorder %v1795, %v105
    %vm1832 = vcmp.eq.s32.totalorder %v1798, %v105
    %vm1833 = vcmp.eq.s32.totalorder %v1801, %v105
    %vm1834 = vcmp.eq.s32.totalorder %v1804, %v105
    %vm1835 = vcmp.eq.s32.totalorder %v1807, %v105
    %vm1836 = vcmp.eq.s32.totalorder %v1810, %v105
    %vm1837 = vcmp.eq.s32.totalorder %v1813, %v105
    %vm1838 = vcmp.eq.s32.totalorder %v1816, %v105
    %vm1839 = vcmp.eq.s32.totalorder %v1819, %v105
    %vm1840 = vcmp.eq.s32.totalorder %v1822, %v105
    %vm1841 = vcmp.eq.s32.totalorder %v1825, %v105
    %v1842 = vsel %vm1826, 1, 0
    %v1843 = vsel %vm1827, 1, 0
    %v1844 = vsel %vm1828, 1, 0
    %v1845 = vsel %vm1829, 1, 0
    %v1846 = vsel %vm1830, 1, 0
    %v1847 = vsel %vm1831, 1, 0
    %v1848 = vsel %vm1832, 1, 0
    %v1849 = vsel %vm1833, 1, 0
    %v1850 = vsel %vm1834, 1, 0
    %v1851 = vsel %vm1835, 1, 0
    %v1852 = vsel %vm1836, 1, 0
    %v1853 = vsel %vm1837, 1, 0
    %v1854 = vsel %vm1838, 1, 0
    %v1855 = vsel %vm1839, 1, 0
    %v1856 = vsel %vm1840, 1, 0
    %v1857 = vsel %vm1841, 1, 0
    %v1858 = vcvt.s32.f32 %v1842
    %v1859 = vcvt.s32.f32 %v1843
    %v1860 = vcvt.s32.f32 %v1844
    %v1861 = vcvt.s32.f32 %v1845
    %v1862 = vcvt.s32.f32 %v1846
    %v1863 = vcvt.s32.f32 %v1847
    %v1864 = vcvt.s32.f32 %v1848
    %v1865 = vcvt.s32.f32 %v1849
    %v1866 = vcvt.s32.f32 %v1850
    %v1867 = vcvt.s32.f32 %v1851
    %v1868 = vcvt.s32.f32 %v1852
    %v1869 = vcvt.s32.f32 %v1853
    %v1870 = vcvt.s32.f32 %v1854
    %v1871 = vcvt.s32.f32 %v1855
    %v1872 = vcvt.s32.f32 %v1856
    %v1873 = vcvt.s32.f32 %v1857
    %1874 = vmatpush.msra.mxu0 %v82
    %1875 = vmatpush.msra.mxu0 %v81
    %1876 = vmatpush.msra.mxu0 %v80
    %1877 = vmatpush.msra.mxu0 %v79
    %1878 = vmatpush.msra.mxu0 %v78
    %1879 = vmatpush.msra.mxu0 %v77
    %1880 = vmatpush.msra.mxu0 %v76
    %1881 = vmatpush.msra.mxu0 %v75
    %1882 = vmatpush.msra.mxu0 %v74
    %1883 = vmatpush.msra.mxu0 %v73
    %1884 = vmatpush.msra.mxu0 %v72
    %1885 = vmatpush.msra.mxu0 %v71
    %1886 = vmatpush.msra.mxu0 %v70
    %1887 = vmatpush.msra.mxu0 %v69
    %1888 = vmatpush.msra.mxu0 %v68
    %1889 = vmatpush.msra.mxu0 %v67
    %1890 = vmatmul.f32.gmra.mxu0 %v1858
    %v1891 = vpop.f32.mrf.mxu0
    %v1892 = vadd.f32 0.0, %v1891
    %1893 = vmatmul.f32.gmra.mxu0 %v1859
    %v1894 = vpop.f32.mrf.mxu0
    %v1895 = vadd.f32 0.0, %v1894
    %1896 = vmatmul.f32.gmra.mxu0 %v1860
    %v1897 = vpop.f32.mrf.mxu0
    %v1898 = vadd.f32 0.0, %v1897
    %1899 = vmatmul.f32.gmra.mxu0 %v1861
    %v1900 = vpop.f32.mrf.mxu0
    %v1901 = vadd.f32 0.0, %v1900
    %1902 = vmatmul.f32.gmra.mxu0 %v1862
    %v1903 = vpop.f32.mrf.mxu0
    %v1904 = vadd.f32 0.0, %v1903
    %1905 = vmatmul.f32.gmra.mxu0 %v1863
    %v1906 = vpop.f32.mrf.mxu0
    %v1907 = vadd.f32 0.0, %v1906
    %1908 = vmatmul.f32.gmra.mxu0 %v1864
    %v1909 = vpop.f32.mrf.mxu0
    %v1910 = vadd.f32 0.0, %v1909
    %1911 = vmatmul.f32.gmra.mxu0 %v1865
    %v1912 = vpop.f32.mrf.mxu0
    %v1913 = vadd.f32 0.0, %v1912
    %1914 = vmatmul.f32.gmra.mxu0 %v1866
    %v1915 = vpop.f32.mrf.mxu0
    %v1916 = vadd.f32 0.0, %v1915
    %1917 = vmatmul.f32.gmra.mxu0 %v1867
    %v1918 = vpop.f32.mrf.mxu0
    %v1919 = vadd.f32 0.0, %v1918
    %1920 = vmatmul.f32.gmra.mxu0 %v1868
    %v1921 = vpop.f32.mrf.mxu0
    %v1922 = vadd.f32 0.0, %v1921
    %1923 = vmatmul.f32.gmra.mxu0 %v1869
    %v1924 = vpop.f32.mrf.mxu0
    %v1925 = vadd.f32 0.0, %v1924
    %1926 = vmatmul.f32.gmra.mxu0 %v1870
    %v1927 = vpop.f32.mrf.mxu0
    %v1928 = vadd.f32 0.0, %v1927
    %1929 = vmatmul.f32.gmra.mxu0 %v1871
    %v1930 = vpop.f32.mrf.mxu0
    %v1931 = vadd.f32 0.0, %v1930
    %1932 = vmatmul.f32.gmra.mxu0 %v1872
    %v1933 = vpop.f32.mrf.mxu0
    %v1934 = vadd.f32 0.0, %v1933
    %1935 = vmatmul.f32.gmra.mxu0 %v1873
    %v1936 = vpop.f32.mrf.mxu0
    %v1937 = vadd.f32 0.0, %v1936
    %1938 = vdwg.mxu0
    %v1939 = vld [vmem:[#allocation2] sm:$0xff]
    %v1940 = vld [vmem:[#allocation2 + $0x8] sm:$0xff]
    %v1941 = vld [vmem:[#allocation2 + $0x10] sm:$0xff]
    %v1942 = vld [vmem:[#allocation2 + $0x18] sm:$0xff]
    %v1943 = vld [vmem:[#allocation2 + $0x20] sm:$0xff]
    %v1944 = vld [vmem:[#allocation2 + $0x28] sm:$0xff]
    %v1945 = vld [vmem:[#allocation2 + $0x30] sm:$0xff]
    %v1946 = vld [vmem:[#allocation2 + $0x38] sm:$0xff]
    %v1947 = vld [vmem:[#allocation2 + $0x40] sm:$0xff]
    %v1948 = vld [vmem:[#allocation2 + $0x48] sm:$0xff]
    %v1949 = vld [vmem:[#allocation2 + $0x50] sm:$0xff]
    %v1950 = vld [vmem:[#allocation2 + $0x58] sm:$0xff]
    %v1951 = vld [vmem:[#allocation2 + $0x60] sm:$0xff]
    %v1952 = vld [vmem:[#allocation2 + $0x68] sm:$0xff]
    %v1953 = vld [vmem:[#allocation2 + $0x70] sm:$0xff]
    %v1954 = vld [vmem:[#allocation2 + $0x78] sm:$0xff]
    %v1955 = vmax.f32 %v1939, %v1892
    %v1956 = vmax.f32 %v1940, %v1895
    %v1957 = vmax.f32 %v1941, %v1898
    %v1958 = vmax.f32 %v1942, %v1901
    %v1959 = vmax.f32 %v1943, %v1904
    %v1960 = vmax.f32 %v1944, %v1907
    %v1961 = vmax.f32 %v1945, %v1910
    %v1962 = vmax.f32 %v1946, %v1913
    %v1963 = vmax.f32 %v1947, %v1916
    %v1964 = vmax.f32 %v1948, %v1919
    %v1965 = vmax.f32 %v1949, %v1922
    %v1966 = vmax.f32 %v1950, %v1925
    %v1967 = vmax.f32 %v1951, %v1928
    %v1968 = vmax.f32 %v1952, %v1931
    %v1969 = vmax.f32 %v1953, %v1934
    %v1970 = vmax.f32 %v1954, %v1937
    %1971 = vst [vmem:[#allocation2] sm:$0xff] %v1955
    %1972 = vst [vmem:[#allocation2 + $0x8] sm:$0xff] %v1956
    %1973 = vst [vmem:[#allocation2 + $0x10] sm:$0xff] %v1957
    %1974 = vst [vmem:[#allocation2 + $0x18] sm:$0xff] %v1958
    %1975 = vst [vmem:[#allocation2 + $0x20] sm:$0xff] %v1959
    %1976 = vst [vmem:[#allocation2 + $0x28] sm:$0xff] %v1960
    %1977 = vst [vmem:[#allocation2 + $0x30] sm:$0xff] %v1961
    %1978 = vst [vmem:[#allocation2 + $0x38] sm:$0xff] %v1962
    %1979 = vst [vmem:[#allocation2 + $0x40] sm:$0xff] %v1963
    %1980 = vst [vmem:[#allocation2 + $0x48] sm:$0xff] %v1964
    %1981 = vst [vmem:[#allocation2 + $0x50] sm:$0xff] %v1965
    %1982 = vst [vmem:[#allocation2 + $0x58] sm:$0xff] %v1966
    %1983 = vst [vmem:[#allocation2 + $0x60] sm:$0xff] %v1967
    %1984 = vst [vmem:[#allocation2 + $0x68] sm:$0xff] %v1968
    %1985 = vst [vmem:[#allocation2 + $0x70] sm:$0xff] %v1969
    %1986 = vst [vmem:[#allocation2 + $0x78] sm:$0xff] %v1970
  $region17: #{run.1} parent=0 // pred_fallthru
    _
  // Predicated region
  $region18: #{run.1} parent=0 // pred_check
    %p1987 = pneg %p42
  $region19: #{run.1} parent=0 // pred_check_branch
    %1989 = sbr.rel (%p1987) target = $region21
  $region20: #{run.1} parent=0 // pred_region
    %v1990 = vld [vmem:[#allocation2] sm:$0xff]
    %v1991 = vld [vmem:[#allocation2 + $0x8] sm:$0xff]
    %v1992 = vld [vmem:[#allocation2 + $0x10] sm:$0xff]
    %v1993 = vld [vmem:[#allocation2 + $0x18] sm:$0xff]
    %v1994 = vld [vmem:[#allocation2 + $0x20] sm:$0xff]
    %v1995 = vld [vmem:[#allocation2 + $0x28] sm:$0xff]
    %v1996 = vld [vmem:[#allocation2 + $0x30] sm:$0xff]
    %v1997 = vld [vmem:[#allocation2 + $0x38] sm:$0xff]
    %v1998 = vld [vmem:[#allocation2 + $0x40] sm:$0xff]
    %v1999 = vld [vmem:[#allocation2 + $0x48] sm:$0xff]
    %v2000 = vld [vmem:[#allocation2 + $0x50] sm:$0xff]
    %v2001 = vld [vmem:[#allocation2 + $0x58] sm:$0xff]
    %v2002 = vld [vmem:[#allocation2 + $0x60] sm:$0xff]
    %v2003 = vld [vmem:[#allocation2 + $0x68] sm:$0xff]
    %v2004 = vld [vmem:[#allocation2 + $0x70] sm:$0xff]
    %v2005 = vld [vmem:[#allocation2 + $0x78] sm:$0xff]
    %2006 = vst [vmem:[%s4] sm:$0xff] %v1990
    %2007 = vst [vmem:[%s4 + $0x8] sm:$0xff] %v1991
    %2008 = vst [vmem:[%s4 + $0x10] sm:$0xff] %v1992
    %2009 = vst [vmem:[%s4 + $0x18] sm:$0xff] %v1993
    %2010 = vst [vmem:[%s4 + $0x20] sm:$0xff] %v1994
    %2011 = vst [vmem:[%s4 + $0x28] sm:$0xff] %v1995
    %2012 = vst [vmem:[%s4 + $0x30] sm:$0xff] %v1996
    %2013 = vst [vmem:[%s4 + $0x38] sm:$0xff] %v1997
    %2014 = vst [vmem:[%s4 + $0x40] sm:$0xff] %v1998
    %2015 = vst [vmem:[%s4 + $0x48] sm:$0xff] %v1999
    %2016 = vst [vmem:[%s4 + $0x50] sm:$0xff] %v2000
    %2017 = vst [vmem:[%s4 + $0x58] sm:$0xff] %v2001
    %2018 = vst [vmem:[%s4 + $0x60] sm:$0xff] %v2002
    %2019 = vst [vmem:[%s4 + $0x68] sm:$0xff] %v2003
    %2020 = vst [vmem:[%s4 + $0x70] sm:$0xff] %v2004
    %2021 = vst [vmem:[%s4 + $0x78] sm:$0xff] %v2005
  $region21: #{run.1} parent=0 // pred_fallthru
    _
  // Predicated region
  $region22: #{run.1} parent=0 // pred_check
    _
  $region23: #{run.1} parent=0 // pred_check_branch
    %2023 = sbr.rel (0) target = $region25
  $region24: #{run.1} parent=0 // pred_region
    _
  $region25: #{run.1} parent=0 // pred_fallthru
    _
  // Predicated region
  $region26: #{run.1} parent=0 // pred_check
    _
  $region27: #{run.1} parent=0 // pred_check_branch
    %2025 = sbr.rel (0) target = $region29
  $region28: #{run.1} parent=0 // pred_region
    _
  $region29: #{run.1} parent=0 // pred_fallthru
    _

</llo_original>
